<compile_context>
chip_gen: v7x
topology: tpu7x:2x2x1
jax: 0.10.0
libtpu: 0.0.40
codegen_flags: <defaults>
</compile_context>

<pallas_src>
import functools

import numpy as np
import jax
import jax.numpy as jnp
from jax.experimental import pallas as pl
from jax.experimental.pallas import tpu as pltpu

# ----------------------------------------------------------------------------- feature config
RES_FEATURE_IDX = {          # res_pred channels
    "rmsf_nor": [0],         # sigmoid
    "ss": [1, 2, 3],         # softmax
    "chi": [4, 5],           # softmax
    "rmsf": [6],             # softplus
    "sasa": [7],             # softplus
}
PAIR_FEATURE_IDX = {         # pair_pred channels
    "corr": [0],             # sigmoid*2-1
    "nma_pair1": [1],        # sigmoid*2-1
    "dist": [2],             # softplus
    "co": [3],               # softplus
}

_SQRT_2_OVER_PI = 0.7978845608028654


# ----------------------------------------------------------------------------- in-kernel math
def _gelu(x):
    # tanh-approximate GELU: tanh runs on the EUP (its own VLIW slot), leaving ~4 VALU ops.
    return 0.5 * x * (1.0 + jnp.tanh(_SQRT_2_OVER_PI * (x + 0.044715 * (x * x * x))))


def _layer_norm(x, gamma, beta, eps=1e-5):
    mu = jnp.mean(x, axis=-1, keepdims=True)
    var = jnp.mean((x - mu) ** 2, axis=-1, keepdims=True)
    return (x - mu) * jax.lax.rsqrt(var + eps) * gamma + beta


# ----------------------------------------------------------------------------- hw / tiling helpers
def _vmem_capacity():
    """Per-core VMEM capacity (bytes); conservative v7x default if the query is unavailable."""
    try:
        info = pltpu.get_tpu_info()
        cap = getattr(info, "vmem_capacity_bytes", None)
        if cap:
            return int(cap)
    except Exception:
        pass
    return 64 * 1024 * 1024


def _vmem_limit(cap):
    return max(32 * 1024 * 1024, min(int(cap) * 3 // 4, 100 * 1024 * 1024))


def _pick_tile(n, target, mult=8):
    """Largest divisor of n that is <= target and a multiple of `mult`, or n itself
    (full extent) when none exists -- either choice satisfies BlockSpec's (8, 128) rule."""
    if n <= target:
        return n
    for d in range(min(target, n), mult - 1, -1):
        if n % d == 0 and d % mult == 0:
            return d
    # TODO(synk): pad ragged sequence lengths to a multiple of 128 instead of falling back
    #             to the full (untileable) extent.
    return n


def _chunk_rows(ti, tj, E, cap_bytes=4 << 20):
    """Inner row-chunk of the pair tile: keeps the (rows*Tj, E) prod scratch small."""
    if ti % 8 != 0:
        return ti
    tc = 8
    for c in (16, 32):
        if ti % c == 0 and c * tj * E * 2 <= cap_bytes:
            tc = c
    return tc


def _pair_tiles(L, E, A, P, budget_bytes):
    """Choose (Ti, Tj, TC) so the pipelined working set fits the generation's VMEM budget.
    Tj must be a multiple of 128 (it is the lane axis of the channel-major output block);
    Ti a multiple of 8; TC is the inner row-chunk (prod scratch is E-independent of Ti/Tj)."""
    def working_set(ti, tj, tc):
        streamed = (ti * tj * A * 4          # fp32 attention tile
                    + (ti + tj) * E * 2      # bf16 q / k tiles
                    + P * ti * tj * 4)       # fp32 channel-major output tile
        chunk = tc * tj * (2 * E + 6 * A + 4 * P)   # prod + mid + atten + pp per-chunk values
        persist = (ti + tj) * A * 4 + 8 * E * A     # q_wd/k_wd + double-buffered bf16 wm halves
        return 2 * streamed + chunk + persist

    ti = _pick_tile(L, 256, 8)
    tj = _pick_tile(L, 256, 128)
    while working_set(ti, tj, _chunk_rows(ti, tj, E)) > budget_bytes:
        shrunk = False
        if ti >= tj and ti > 8:
            nt = _pick_tile(L, max(8, ti // 2), 8)
            if nt < ti:
                ti, shrunk = nt, True
        if not shrunk and tj > 128:
            nt = _pick_tile(L, max(128, tj // 2), 128)
            if nt < tj:
                tj, shrunk = nt, True
        if not shrunk and ti > 8:
            nt = _pick_tile(L, max(8, ti // 2), 8)
            if nt < ti:
                ti, shrunk = nt, True
        if not shrunk:
            break
    return ti, tj, _chunk_rows(ti, tj, E)


def _const_spec(arr):
    """Full-array block that stays resident (constant block index) across the grid."""
    nd = arr.ndim
    return pl.BlockSpec(arr.shape, lambda *args, _nd=nd: (0,) * _nd)


# ----------------------------------------------------------------------------- kernels
def _res_heads_kernel(x_ref,
                      w1p_ref, b1p_ref, gp_ref, bp_ref, w2pt_ref, b2pt_ref,
                      w1t_ref, b1t_ref, gt_ref, bt_ref,
                      wq_ref, bq_ref, wk_ref, bk_ref,
                      res_pred_ref, q_ref, k_ref):
    """res_pred_nn + res_transform_nn for one (batch, L-tile) block.

    res_pred is emitted channel-major (R, TL) so its store is lane-dense (R=8 otherwise
    forces masked partial stores); q / k are emitted in bf16 (pair kernel consumes bf16).
    """
    x = x_ref[0].astype(jnp.bfloat16)                       # (TL, E)

    def trunk(w1, b1, g, be):
        # Linear -> GELU -> LayerNorm  (Dropout = identity at inference).
        h = jnp.dot(x, w1[...], preferred_element_type=jnp.float32) + b1[...]
        h = _gelu(h)
        return _layer_norm(h, g[...], be[...]).astype(jnp.bfloat16)

    hp = trunk(w1p_ref, b1p_ref, gp_ref, bp_ref)
    # transposed projection: (R, E) x (TL, E)^T -> (R, TL); tiny matmul, lane-dense store.
    res_pred_ref[0] = (jax.lax.dot_general(w2pt_ref[...], hp, (((1,), (1,)), ((), ())),
                                           preferred_element_type=jnp.float32)
                       + b2pt_ref[...])

    ht = trunk(w1t_ref, b1t_ref, gt_ref, bt_ref)
    # w2t was split host-side -> q/k come straight from two matmuls.
    q_ref[0] = (jnp.dot(ht, wq_ref[...], preferred_element_type=jnp.float32)
                + bq_ref[...]).astype(q_ref.dtype)
    k_ref[0] = (jnp.dot(ht, wk_ref[...], preferred_element_type=jnp.float32)
                + bk_ref[...]).astype(k_ref.dtype)


def _pair_kernel(q_ref, k_ref, atten_ref,
                 wmp_ref, wmd_ref, bm_ref, wpmt_ref, wpat_ref, bpt_ref,
                 out_ref, *, n_chunks, chunk_rows):
    """pair_middle_linear + GELU + pair_pred_linear for one (batch, i-tile, j-tile) block.

    torch: prod = q[:,None,:,:] * k[:,:,None,:]  => pair[i, j] uses q[j] and k[i].
    The i-rows of the tile are walked in chunks of `chunk_rows` so the (rows*Tj, E) prod
    scratch stays small and E-independent.  Output is channel-major (1, P, Ti, Tj) so the
    stores are full-lane (Tj on the 128-lane axis) instead of P=4-lane masked stores.
    """
    q = q_ref[0]                        # (Tj, E) bf16 -- column tile
    Tj = q.shape[0]
    P = out_ref.shape[1]

    # Rank-separable diff branch: diff[i,j] @ Wm_diff == (q @ Wm_diff)[j] - (k @ Wm_diff)[i].
    q_wd = jnp.dot(q, wmd_ref[...], preferred_element_type=jnp.float32) + bm_ref[...]  # (Tj, A)
    bp_t = bpt_ref[...]                 # (P, 1)

    @pl.loop(0, n_chunks)
    def _(c):
        r0 = pl.multiple_of(c * chunk_rows, chunk_rows)
        k_c = k_ref[0, pl.ds(r0, chunk_rows), :]                                  # (TC, E) bf16
        k_wd = jnp.dot(k_c, wmd_ref[...], preferred_element_type=jnp.float32)     # (TC, A)

        prod = (k_c[:, None, :] * q[None, :, :]).reshape(chunk_rows * Tj, -1)     # (TC*Tj, E) bf16
        mid = jnp.dot(prod, wmp_ref[...], preferred_element_type=jnp.float32)     # (TC*Tj, A)
        mid = mid.reshape(chunk_rows, Tj, -1) + q_wd[None, :, :] - k_wd[:, None, :]
        mid = _gelu(mid).astype(jnp.bfloat16).reshape(chunk_rows * Tj, -1)

        # attention arrives fp32 straight from HBM; cast per chunk (hides under the MXU).
        atten = atten_ref[0, pl.ds(r0, chunk_rows), :, :].astype(jnp.bfloat16)
        atten = atten.reshape(chunk_rows * Tj, -1)

        # transposed projection -> (P, TC*Tj): store below is a dense full-lane vst.
        pp = (jax.lax.dot_general(wpmt_ref[...], mid, (((1,), (1,)), ((), ())),
                                  preferred_element_type=jnp.float32)
              + jax.lax.dot_general(wpat_ref[...], atten, (((1,), (1,)), ((), ())),
                                    preferred_element_type=jnp.float32)
              + bp_t)
        out_ref[0, :, pl.ds(r0, chunk_rows), :] = pp.reshape(P, chunk_rows, Tj)


# ----------------------------------------------------------------------------- pallas wrappers
def res_heads_pallas(res_emb, p, *, tile_l=None, vmem_limit_bytes=None):
    """Returns (res_pred_cm (B, R, L) f32, q (B, L, E) bf16, k (B, L, E) bf16)."""
    B, L, E = res_emb.shape
    R = p["w2p"].shape[1]
    cap = _vmem_capacity()
    if vmem_limit_bytes is None:
        vmem_limit_bytes = _vmem_limit(cap)
    tl_target = 512 if cap >= 96 * 1024 * 1024 else 256
    TL = tile_l if tile_l is not None else _pick_tile(L, tl_target, 128)

    bf = lambda w: w.astype(jnp.bfloat16)
    # Host-side splits / transposes so kernel operands are whole, tile-aligned arrays.
    wq, wk = bf(p["w2t"][:, :E]), bf(p["w2t"][:, E:])
    bq, bk = p["b2t"][:, :E], p["b2t"][:, E:]
    w2p_t = bf(p["w2p"].T)                                   # (R, E)
    b2p_t = p["b2p"].astype(jnp.float32).reshape(R, 1)       # (R, 1)
    weights = [bf(p["w1p"]), p["b1p"], p["gp"], p["bp"], w2p_t, b2p_t,
               bf(p["w1t"]), p["b1t"], p["gt"], p["bt"], wq, bq, wk, bk]

    grid = (B, L // TL)
    in_specs = ([pl.BlockSpec((1, TL, E), lambda b, l: (b, l, 0))]
                + [_const_spec(w) for w in weights])
    out_shape = (jax.ShapeDtypeStruct((B, R, L), jnp.float32),
                 jax.ShapeDtypeStruct((B, L, E), jnp.bfloat16),
                 jax.ShapeDtypeStruct((B, L, E), jnp.bfloat16))
    out_specs = (pl.BlockSpec((1, R, TL), lambda b, l: (b, 0, l)),     # channel-major res_pred
                 pl.BlockSpec((1, TL, E), lambda b, l: (b, l, 0)),
                 pl.BlockSpec((1, TL, E), lambda b, l: (b, l, 0)))
    cost = pl.CostEstimate(
        flops=int(2 * B * L * E * (4 * E + R)),
        transcendentals=int(2 * B * L * (E + 1)),
        bytes_accessed=int(4 * B * L * E + 4 * B * L * R + 2 * 2 * B * L * E
                           + 2 * E * (4 * E + R)),
    )
    return pl.pallas_call(
        _res_heads_kernel,
        grid=grid,
        in_specs=in_specs,
        out_specs=out_specs,
        out_shape=out_shape,
        compiler_params=pltpu.CompilerParams(
            dimension_semantics=("parallel", "parallel"),
            vmem_limit_bytes=vmem_limit_bytes),
        cost_estimate=cost,
    )(res_emb, *weights)


def pair_pred_pallas(q, k, pair_atten, p, *, tiles=None, vmem_limit_bytes=None):
    """Returns channel-major pair predictions (B, P, L, L) fp32."""
    B, L, E = q.shape
    A = pair_atten.shape[-1]
    P = p["wp"].shape[1]
    cap = _vmem_capacity()
    if vmem_limit_bytes is None:
        vmem_limit_bytes = _vmem_limit(cap)
    budget = max(16 * 1024 * 1024, cap // 3)       # ~20 MiB on v7x, ~42 MiB on v5e/v6e
    Ti, Tj, TC = tiles if tiles is not None else _pair_tiles(L, E, A, P, budget)

    if q.dtype != jnp.bfloat16:
        q = q.astype(jnp.bfloat16)                  # no-op in the designed flow
    if k.dtype != jnp.bfloat16:
        k = k.astype(jnp.bfloat16)

    bf = lambda w: w.astype(jnp.bfloat16)
    # Host-side splits of wm / wp; wp halves are transposed for the channel-major projection.
    wmp, wmd = bf(p["wm"][:E]), bf(p["wm"][E:])                  # (E, A) each
    wpm_t, wpa_t = bf(p["wp"][:A].T), bf(p["wp"][A:].T)          # (P, A) each
    bm = p["bm"].astype(jnp.float32)                             # (1, A)
    bp_t = p["bp"].astype(jnp.float32).reshape(P, 1)             # (P, 1)
    # NOTE: pair_atten is fed fp32 (no host-side bf16 pass); the kernel casts per chunk.
    weights = [wmp, wmd, bm, wpm_t, wpa_t, bp_t]

    grid = (B, L // Ti, L // Tj)
    in_specs = ([pl.BlockSpec((1, Tj, E), lambda b, i, j: (b, j, 0)),        # q -> column tile
                 pl.BlockSpec((1, Ti, E), lambda b, i, j: (b, i, 0)),        # k -> row tile
                 pl.BlockSpec((1, Ti, Tj, A), lambda b, i, j: (b, i, j, 0))]
                + [_const_spec(w) for w in weights])
    out_specs = pl.BlockSpec((1, P, Ti, Tj), lambda b, i, j: (b, 0, i, j))   # channel-major
    out_shape = jax.ShapeDtypeStruct((B, P, L, L), jnp.float32)
    cost = pl.CostEstimate(
        flops=int(2 * B * L * L * A * (E + 2 * P) + 2 * B * L * L * E),
        transcendentals=int(B * L * L * A),
        bytes_accessed=int(4 * B * L * L * A + 4 * P * B * L * L
                           + 2 * B * L * E * ((L // Ti) + (L // Tj))
                           + 2 * (2 * E * A + 2 * A * P)),
    )
    kernel = functools.partial(_pair_kernel, n_chunks=Ti // TC, chunk_rows=TC)
    return pl.pallas_call(
        kernel,
        grid=grid,
        in_specs=in_specs,
        out_specs=out_specs,
        out_shape=out_shape,
        compiler_params=pltpu.CompilerParams(
            dimension_semantics=("parallel", "parallel", "parallel"),
            vmem_limit_bytes=vmem_limit_bytes),
        cost_estimate=cost,
    )(q, k, pair_atten, *weights)


# ----------------------------------------------------------------------------- glue (plain JAX)
def _softplus_torch(x):
    # torch.nn.Softplus(beta=1.0, threshold=2.0) as configured in ESMwrap.
    return jnp.where(x > 2.0, x, jnp.log1p(jnp.exp(jnp.minimum(x, 2.0))))


def esmwrap_forward(res_emb, pair_atten, params,
                    return_res_emb=False, return_attention_map=False,
                    return_res_pred=True, return_pair_pred=True):
    output = {}
    if return_res_emb:
        output["res_emb"] = res_emb
    if return_attention_map:
        output["attention_map"] = pair_atten

    res_pred_cm, q, k = res_heads_pallas(res_emb, params["res"])   # res_pred_cm: (B, R, L)

    if return_res_pred:
        for feature, idx in RES_FEATURE_IDX.items():
            sl = jnp.moveaxis(res_pred_cm[:, jnp.asarray(idx), :], 1, -1)   # (B, L, n)
            if feature == "rmsf_nor":
                output[feature] = jax.nn.sigmoid(sl)
            elif feature in ("ss", "chi", "phi", "psi"):
                output[feature] = jax.nn.softmax(sl, axis=-1)
            else:
                output[feature] = _softplus_torch(sl)

    if return_pair_pred:
        pair_pred_cm = pair_pred_pallas(q, k, pair_atten, params["pair"])   # (B, P, L, L)
        for feature, idx in PAIR_FEATURE_IDX.items():
            sl = jnp.moveaxis(pair_pred_cm[:, jnp.asarray(idx), :, :], 1, -1)   # (B, L, L, n)
            if feature in ("corr", "nma_pair1", "nma_pair2", "nma_pair3"):
                output[feature] = jax.nn.sigmoid(sl) * 2 - 1.0
            else:
                output[feature] = _softplus_torch(sl)
    return output


# ----------------------------------------------------------------------------- params / reference
def init_params(key, E, R, A, P):
    ks = jax.random.split(key, 6)

    def lin_w(kk, fin, fout):
        # deterministic stand-in for nn.Linear weight; stored (in, out)
        return jax.random.normal(kk, (fin, fout), jnp.float32) / np.sqrt(fin)

    z = lambda n: jnp.zeros((1, n), jnp.float32)
    o = lambda n: jnp.ones((1, n), jnp.float32)
    res = dict(
        w1p=lin_w(ks[0], E, E), b1p=z(E), gp=o(E), bp=z(E), w2p=lin_w(ks[1], E, R), b2p=z(R),
        w1t=lin_w(ks[2], E, E), b1t=z(E), gt=o(E), bt=z(E), w2t=lin_w(ks[3], E, 2 * E), b2t=z(2 * E),
    )
    pair = dict(wm=lin_w(ks[4], 2 * E, A), bm=z(A), wp=lin_w(ks[5], 2 * A, P), bp=z(P))
    return {"res": res, "pair": pair}


def reference_raw(res_emb, pair_atten, params):
    """Pure-JAX fp32 mirror of the PyTorch math (pre-activation tensors, exact GELU)."""
    pr, pp = params["res"], params["pair"]

    def head(x, w1, b1, g, be, w2, b2):
        h = jax.nn.gelu(x @ w1 + b1, approximate=False)
        mu = h.mean(-1, keepdims=True)
        var = ((h - mu) ** 2).mean(-1, keepdims=True)
        h = (h - mu) / jnp.sqrt(var + 1e-5) * g + be
        return h @ w2 + b2

    res_pred = head(res_emb, pr["w1p"], pr["b1p"], pr["gp"], pr["bp"], pr["w2p"], pr["b2p"])
    s = head(res_emb, pr["w1t"], pr["b1t"], pr["gt"], pr["bt"], pr["w2t"], pr["b2t"])
    q, k = jnp.split(s, 2, axis=-1)
    prod = q[:, None, :, :] * k[:, :, None, :]
    diff = q[:, None, :, :] - k[:, :, None, :]
    mid = jax.nn.gelu(jnp.concatenate([prod, diff], -1) @ pp["wm"] + pp["bm"][0], approximate=False)
    pair_pred = jnp.concatenate([mid, pair_atten], -1) @ pp["wp"] + pp["bp"][0]
    return res_pred, q, k, pair_pred


# ----------------------------------------------------------------------------- main
if __name__ == "__main__":
    B, L, E, A, R, P = 2, 8, 32, 16, 8, 4   # batch, seq, embed_dim, atten_dim, res_out_dim, pair_out_dim
    key = jax.random.PRNGKey(0)
    k_emb, k_att, k_par = jax.random.split(key, 3)

    # synthetic ESM2 outputs (backbone not reimplemented, see TODO at top)
    res_emb = jax.random.normal(k_emb, (B, L, E), jnp.float32)
    pair_atten = jax.nn.softmax(jax.random.normal(k_att, (B, L, L, A), jnp.float32), axis=2)
    params = init_params(k_par, E, R, A, P)

    fwd = jax.jit(lambda re, pa: esmwrap_forward(re, pa, params))
    out = fwd(res_emb, pair_atten)
    out = jax.tree_util.tree_map(lambda x: x.block_until_ready(), out)

    # sanity check: kernel raw tensors vs exact fp32 reference of the PyTorch math.
    # (kernels use bf16 MXU operands / bf16 q,k + tanh-GELU, so tolerances are loose-ish.)
    res_pred_k, q_k, k_k = res_heads_pallas(res_emb, params["res"])
    pair_pred_k = pair_pred_pallas(q_k, k_k, pair_atten, params["pair"])
    jax.block_until_ready((res_pred_k, q_k, k_k, pair_pred_k))
    res_pred_r, q_r, k_r, pair_pred_r = reference_raw(res_emb, pair_atten, params)

    res_pred_kn = np.moveaxis(np.asarray(res_pred_k).astype(np.float32), 1, -1)   # (B, L, R)
    pair_pred_kn = np.moveaxis(np.asarray(pair_pred_k).astype(np.float32), 1, -1) # (B, L, L, P)
    np.testing.assert_allclose(res_pred_kn, np.asarray(res_pred_r), rtol=5e-2, atol=5e-2)
    np.testing.assert_allclose(np.asarray(q_k).astype(np.float32), np.asarray(q_r), rtol=5e-2, atol=5e-2)
    np.testing.assert_allclose(np.asarray(k_k).astype(np.float32), np.asarray(k_r), rtol=5e-2, atol=5e-2)
    np.testing.assert_allclose(pair_pred_kn, np.asarray(pair_pred_r), rtol=5e-2, atol=1e-1)

    print("KERNEL_OK")
</pallas_src>

<mosaic_0001>
module attributes {stable_mosaic.version = 11 : i64} {
  func.func @_res_heads_kernel(%arg0: i32, %arg1: i32, %arg2: memref<1x8x32xf32, #tpu.memory_space<vmem>>, %arg3: memref<32x32xbf16, #tpu.memory_space<vmem>>, %arg4: memref<1x32xf32, #tpu.memory_space<vmem>>, %arg5: memref<1x32xf32, #tpu.memory_space<vmem>>, %arg6: memref<1x32xf32, #tpu.memory_space<vmem>>, %arg7: memref<8x32xbf16, #tpu.memory_space<vmem>>, %arg8: memref<8x1xf32, #tpu.memory_space<vmem>>, %arg9: memref<32x32xbf16, #tpu.memory_space<vmem>>, %arg10: memref<1x32xf32, #tpu.memory_space<vmem>>, %arg11: memref<1x32xf32, #tpu.memory_space<vmem>>, %arg12: memref<1x32xf32, #tpu.memory_space<vmem>>, %arg13: memref<32x32xbf16, #tpu.memory_space<vmem>>, %arg14: memref<1x32xf32, #tpu.memory_space<vmem>>, %arg15: memref<32x32xbf16, #tpu.memory_space<vmem>>, %arg16: memref<1x32xf32, #tpu.memory_space<vmem>>, %arg17: memref<1x8x8xf32, #tpu.memory_space<vmem>>, %arg18: memref<1x8x32xbf16, #tpu.memory_space<vmem>>, %arg19: memref<1x8x32xbf16, #tpu.memory_space<vmem>>) attributes {dimension_semantics = [#tpu.dimension_semantics<parallel>, #tpu.dimension_semantics<parallel>], iteration_bounds = array<i64: 2, 1>, scalar_prefetch = 0 : i64, scratch_operands = 0 : i64, tpu.core_type = #tpu.core_type<tc>, window_params = [{transform_indices = @transform_0, window_bounds = array<i64: 1, 8, 32>}, {pipeline_mode = #tpu.pipeline_mode<synchronous>, transform_indices = @transform_1, window_bounds = array<i64: 32, 32>}, {pipeline_mode = #tpu.pipeline_mode<synchronous>, transform_indices = @transform_2, window_bounds = array<i64: 1, 32>}, {pipeline_mode = #tpu.pipeline_mode<synchronous>, transform_indices = @transform_3, window_bounds = array<i64: 1, 32>}, {pipeline_mode = #tpu.pipeline_mode<synchronous>, transform_indices = @transform_4, window_bounds = array<i64: 1, 32>}, {pipeline_mode = #tpu.pipeline_mode<synchronous>, transform_indices = @transform_5, window_bounds = array<i64: 8, 32>}, {pipeline_mode = #tpu.pipeline_mode<synchronous>, transform_indices = @transform_6, window_bounds = array<i64: 8, 1>}, {pipeline_mode = #tpu.pipeline_mode<synchronous>, transform_indices = @transform_7, window_bounds = array<i64: 32, 32>}, {pipeline_mode = #tpu.pipeline_mode<synchronous>, transform_indices = @transform_8, window_bounds = array<i64: 1, 32>}, {pipeline_mode = #tpu.pipeline_mode<synchronous>, transform_indices = @transform_9, window_bounds = array<i64: 1, 32>}, {pipeline_mode = #tpu.pipeline_mode<synchronous>, transform_indices = @transform_10, window_bounds = array<i64: 1, 32>}, {pipeline_mode = #tpu.pipeline_mode<synchronous>, transform_indices = @transform_11, window_bounds = array<i64: 32, 32>}, {pipeline_mode = #tpu.pipeline_mode<synchronous>, transform_indices = @transform_12, window_bounds = array<i64: 1, 32>}, {pipeline_mode = #tpu.pipeline_mode<synchronous>, transform_indices = @transform_13, window_bounds = array<i64: 32, 32>}, {pipeline_mode = #tpu.pipeline_mode<synchronous>, transform_indices = @transform_14, window_bounds = array<i64: 1, 32>}, {transform_indices = @transform_15, window_bounds = array<i64: 1, 8, 8>}, {transform_indices = @transform_16, window_bounds = array<i64: 1, 8, 32>}, {transform_indices = @transform_17, window_bounds = array<i64: 1, 8, 32>}]} {
    %c0 = arith.constant 0 : index
    %c0_0 = arith.constant 0 : index
    %c0_1 = arith.constant 0 : index
    %0 = vector.load %arg2[%c0, %c0_0, %c0_1] : memref<1x8x32xf32, #tpu.memory_space<vmem>>, vector<1x8x32xf32>
    %1 = vector.shape_cast %0 : vector<1x8x32xf32> to vector<8x32xf32>
    %2 = arith.truncf %1 : vector<8x32xf32> to vector<8x32xbf16>
    %c0_2 = arith.constant 0 : index
    %c0_3 = arith.constant 0 : index
    %3 = vector.load %arg3[%c0_2, %c0_3] : memref<32x32xbf16, #tpu.memory_space<vmem>>, vector<32x32xbf16>
    %cst = arith.constant dense<0.000000e+00> : vector<8x32xf32>
    %4 = tpu.matmul %2, %3, %cst {dimension_numbers = #tpu.dot_dimension_numbers<[1], [0], [0], [1], [0, 0, 1, 1], [], []>} : vector<8x32xbf16>, vector<32x32xbf16>, vector<8x32xf32> -> vector<8x32xf32>
    %c0_4 = arith.constant 0 : index
    %c0_5 = arith.constant 0 : index
    %5 = vector.load %arg4[%c0_4, %c0_5] : memref<1x32xf32, #tpu.memory_space<vmem>>, vector<1x32xf32>
    %6 = vector.broadcast %5 : vector<1x32xf32> to vector<8x32xf32>
    %7 = arith.addf %4, %6 : vector<8x32xf32>
    %cst_6 = arith.constant 5.000000e-01 : f32
    %8 = vector.broadcast %cst_6 : f32 to vector<8x32xf32>
    %9 = arith.mulf %8, %7 : vector<8x32xf32>
    %10 = arith.mulf %7, %7 : vector<8x32xf32>
    %11 = arith.mulf %10, %7 : vector<8x32xf32>
    %cst_7 = arith.constant 4.471500e-02 : f32
    %12 = vector.broadcast %cst_7 : f32 to vector<8x32xf32>
    %13 = arith.mulf %12, %11 : vector<8x32xf32>
    %14 = arith.addf %7, %13 : vector<8x32xf32>
    %cst_8 = arith.constant 0.797884583 : f32
    %15 = vector.broadcast %cst_8 : f32 to vector<8x32xf32>
    %16 = arith.mulf %15, %14 : vector<8x32xf32>
    %17 = math.tanh %16 : vector<8x32xf32>
    %cst_9 = arith.constant 1.000000e+00 : f32
    %18 = vector.broadcast %cst_9 : f32 to vector<8x32xf32>
    %19 = arith.addf %18, %17 : vector<8x32xf32>
    %20 = arith.mulf %9, %19 : vector<8x32xf32>
    %c0_10 = arith.constant 0 : index
    %c0_11 = arith.constant 0 : index
    %21 = vector.load %arg5[%c0_10, %c0_11] : memref<1x32xf32, #tpu.memory_space<vmem>>, vector<1x32xf32>
    %c0_12 = arith.constant 0 : index
    %c0_13 = arith.constant 0 : index
    %22 = vector.load %arg6[%c0_12, %c0_13] : memref<1x32xf32, #tpu.memory_space<vmem>>, vector<1x32xf32>
    %cst_14 = arith.constant dense<0.000000e+00> : vector<8xf32>
    %23 = vector.multi_reduction <add>, %20, %cst_14 [1] : vector<8x32xf32> to vector<8xf32>
    %24 = vector.shape_cast %23 : vector<8xf32> to vector<8x1xf32>
    %cst_15 = arith.constant 3.200000e+01 : f32
    %25 = vector.broadcast %cst_15 : f32 to vector<8x1xf32>
    %26 = arith.divf %24, %25 : vector<8x1xf32>
    %27 = vector.broadcast %26 : vector<8x1xf32> to vector<8x32xf32>
    %28 = arith.subf %20, %27 : vector<8x32xf32>
    %29 = arith.mulf %28, %28 : vector<8x32xf32>
    %cst_16 = arith.constant dense<0.000000e+00> : vector<8xf32>
    %30 = vector.multi_reduction <add>, %29, %cst_16 [1] : vector<8x32xf32> to vector<8xf32>
    %31 = vector.shape_cast %30 : vector<8xf32> to vector<8x1xf32>
    %cst_17 = arith.constant 3.200000e+01 : f32
    %32 = vector.broadcast %cst_17 : f32 to vector<8x1xf32>
    %33 = arith.divf %31, %32 : vector<8x1xf32>
    %34 = vector.broadcast %26 : vector<8x1xf32> to vector<8x32xf32>
    %35 = arith.subf %20, %34 : vector<8x32xf32>
    %cst_18 = arith.constant 9.99999974E-6 : f32
    %36 = vector.broadcast %cst_18 : f32 to vector<8x1xf32>
    %37 = arith.addf %33, %36 : vector<8x1xf32>
    %38 = math.rsqrt %37 : vector<8x1xf32>
    %39 = vector.broadcast %38 : vector<8x1xf32> to vector<8x32xf32>
    %40 = arith.mulf %35, %39 : vector<8x32xf32>
    %41 = vector.broadcast %21 : vector<1x32xf32> to vector<8x32xf32>
    %42 = arith.mulf %40, %41 : vector<8x32xf32>
    %43 = vector.broadcast %22 : vector<1x32xf32> to vector<8x32xf32>
    %44 = arith.addf %42, %43 : vector<8x32xf32>
    %45 = arith.truncf %44 : vector<8x32xf32> to vector<8x32xbf16>
    %c0_19 = arith.constant 0 : index
    %c0_20 = arith.constant 0 : index
    %46 = vector.load %arg7[%c0_19, %c0_20] : memref<8x32xbf16, #tpu.memory_space<vmem>>, vector<8x32xbf16>
    %cst_21 = arith.constant dense<0.000000e+00> : vector<8x8xf32>
    %47 = tpu.matmul %46, %45, %cst_21 {dimension_numbers = #tpu.dot_dimension_numbers<[1], [1], [0], [0], [0, 0, 1, 0], [], []>} : vector<8x32xbf16>, vector<8x32xbf16>, vector<8x8xf32> -> vector<8x8xf32>
    %c0_22 = arith.constant 0 : index
    %c0_23 = arith.constant 0 : index
    %48 = vector.load %arg8[%c0_22, %c0_23] : memref<8x1xf32, #tpu.memory_space<vmem>>, vector<8x1xf32>
    %49 = vector.broadcast %48 : vector<8x1xf32> to vector<8x8xf32>
    %50 = arith.addf %47, %49 : vector<8x8xf32>
    %c0_24 = arith.constant 0 : index
    %c0_25 = arith.constant 0 : index
    %c0_26 = arith.constant 0 : index
    %51 = vector.load %arg17[%c0_24, %c0_25, %c0_26] : memref<1x8x8xf32, #tpu.memory_space<vmem>>, vector<1x8x8xf32>
    %52 = vector.shape_cast %51 : vector<1x8x8xf32> to vector<8x8xf32>
    %53 = vector.shape_cast %50 : vector<8x8xf32> to vector<1x8x8xf32>
    tpu.vector_store %arg17[%c0_24, %c0_25, %c0_26], %53 {strides = array<i32>} : memref<1x8x8xf32, #tpu.memory_space<vmem>>, vector<1x8x8xf32>,
    %c0_27 = arith.constant 0 : index
    %c0_28 = arith.constant 0 : index
    %54 = vector.load %arg9[%c0_27, %c0_28] : memref<32x32xbf16, #tpu.memory_space<vmem>>, vector<32x32xbf16>
    %cst_29 = arith.constant dense<0.000000e+00> : vector<8x32xf32>
    %55 = tpu.matmul %2, %54, %cst_29 {dimension_numbers = #tpu.dot_dimension_numbers<[1], [0], [0], [1], [0, 0, 1, 1], [], []>} : vector<8x32xbf16>, vector<32x32xbf16>, vector<8x32xf32> -> vector<8x32xf32>
    %c0_30 = arith.constant 0 : index
    %c0_31 = arith.constant 0 : index
    %56 = vector.load %arg10[%c0_30, %c0_31] : memref<1x32xf32, #tpu.memory_space<vmem>>, vector<1x32xf32>
    %57 = vector.broadcast %56 : vector<1x32xf32> to vector<8x32xf32>
    %58 = arith.addf %55, %57 : vector<8x32xf32>
    %cst_32 = arith.constant 5.000000e-01 : f32
    %59 = vector.broadcast %cst_32 : f32 to vector<8x32xf32>
    %60 = arith.mulf %59, %58 : vector<8x32xf32>
    %61 = arith.mulf %58, %58 : vector<8x32xf32>
    %62 = arith.mulf %61, %58 : vector<8x32xf32>
    %cst_33 = arith.constant 4.471500e-02 : f32
    %63 = vector.broadcast %cst_33 : f32 to vector<8x32xf32>
    %64 = arith.mulf %63, %62 : vector<8x32xf32>
    %65 = arith.addf %58, %64 : vector<8x32xf32>
    %cst_34 = arith.constant 0.797884583 : f32
    %66 = vector.broadcast %cst_34 : f32 to vector<8x32xf32>
    %67 = arith.mulf %66, %65 : vector<8x32xf32>
    %68 = math.tanh %67 : vector<8x32xf32>
    %cst_35 = arith.constant 1.000000e+00 : f32
    %69 = vector.broadcast %cst_35 : f32 to vector<8x32xf32>
    %70 = arith.addf %69, %68 : vector<8x32xf32>
    %71 = arith.mulf %60, %70 : vector<8x32xf32>
    %c0_36 = arith.constant 0 : index
    %c0_37 = arith.constant 0 : index
    %72 = vector.load %arg11[%c0_36, %c0_37] : memref<1x32xf32, #tpu.memory_space<vmem>>, vector<1x32xf32>
    %c0_38 = arith.constant 0 : index
    %c0_39 = arith.constant 0 : index
    %73 = vector.load %arg12[%c0_38, %c0_39] : memref<1x32xf32, #tpu.memory_space<vmem>>, vector<1x32xf32>
    %cst_40 = arith.constant dense<0.000000e+00> : vector<8xf32>
    %74 = vector.multi_reduction <add>, %71, %cst_40 [1] : vector<8x32xf32> to vector<8xf32>
    %75 = vector.shape_cast %74 : vector<8xf32> to vector<8x1xf32>
    %cst_41 = arith.constant 3.200000e+01 : f32
    %76 = vector.broadcast %cst_41 : f32 to vector<8x1xf32>
    %77 = arith.divf %75, %76 : vector<8x1xf32>
    %78 = vector.broadcast %77 : vector<8x1xf32> to vector<8x32xf32>
    %79 = arith.subf %71, %78 : vector<8x32xf32>
    %80 = arith.mulf %79, %79 : vector<8x32xf32>
    %cst_42 = arith.constant dense<0.000000e+00> : vector<8xf32>
    %81 = vector.multi_reduction <add>, %80, %cst_42 [1] : vector<8x32xf32> to vector<8xf32>
    %82 = vector.shape_cast %81 : vector<8xf32> to vector<8x1xf32>
    %cst_43 = arith.constant 3.200000e+01 : f32
    %83 = vector.broadcast %cst_43 : f32 to vector<8x1xf32>
    %84 = arith.divf %82, %83 : vector<8x1xf32>
    %85 = vector.broadcast %77 : vector<8x1xf32> to vector<8x32xf32>
    %86 = arith.subf %71, %85 : vector<8x32xf32>
    %cst_44 = arith.constant 9.99999974E-6 : f32
    %87 = vector.broadcast %cst_44 : f32 to vector<8x1xf32>
    %88 = arith.addf %84, %87 : vector<8x1xf32>
    %89 = math.rsqrt %88 : vector<8x1xf32>
    %90 = vector.broadcast %89 : vector<8x1xf32> to vector<8x32xf32>
    %91 = arith.mulf %86, %90 : vector<8x32xf32>
    %92 = vector.broadcast %72 : vector<1x32xf32> to vector<8x32xf32>
    %93 = arith.mulf %91, %92 : vector<8x32xf32>
    %94 = vector.broadcast %73 : vector<1x32xf32> to vector<8x32xf32>
    %95 = arith.addf %93, %94 : vector<8x32xf32>
    %96 = arith.truncf %95 : vector<8x32xf32> to vector<8x32xbf16>
    %c0_45 = arith.constant 0 : index
    %c0_46 = arith.constant 0 : index
    %97 = vector.load %arg13[%c0_45, %c0_46] : memref<32x32xbf16, #tpu.memory_space<vmem>>, vector<32x32xbf16>
    %cst_47 = arith.constant dense<0.000000e+00> : vector<8x32xf32>
    %98 = tpu.matmul %96, %97, %cst_47 {dimension_numbers = #tpu.dot_dimension_numbers<[1], [0], [0], [1], [0, 0, 1, 1], [], []>} : vector<8x32xbf16>, vector<32x32xbf16>, vector<8x32xf32> -> vector<8x32xf32>
    %c0_48 = arith.constant 0 : index
    %c0_49 = arith.constant 0 : index
    %99 = vector.load %arg14[%c0_48, %c0_49] : memref<1x32xf32, #tpu.memory_space<vmem>>, vector<1x32xf32>
    %100 = vector.broadcast %99 : vector<1x32xf32> to vector<8x32xf32>
    %101 = arith.addf %98, %100 : vector<8x32xf32>
    %102 = arith.truncf %101 : vector<8x32xf32> to vector<8x32xbf16>
    %c0_50 = arith.constant 0 : index
    %c0_51 = arith.constant 0 : index
    %c0_52 = arith.constant 0 : index
    %103 = vector.load %arg18[%c0_50, %c0_51, %c0_52] : memref<1x8x32xbf16, #tpu.memory_space<vmem>>, vector<1x8x32xbf16>
    %104 = vector.shape_cast %103 : vector<1x8x32xbf16> to vector<8x32xbf16>
    %105 = vector.shape_cast %102 : vector<8x32xbf16> to vector<1x8x32xbf16>
    tpu.vector_store %arg18[%c0_50, %c0_51, %c0_52], %105 {strides = array<i32>} : memref<1x8x32xbf16, #tpu.memory_space<vmem>>, vector<1x8x32xbf16>,
    %c0_53 = arith.constant 0 : index
    %c0_54 = arith.constant 0 : index
    %106 = vector.load %arg15[%c0_53, %c0_54] : memref<32x32xbf16, #tpu.memory_space<vmem>>, vector<32x32xbf16>
    %cst_55 = arith.constant dense<0.000000e+00> : vector<8x32xf32>
    %107 = tpu.matmul %96, %106, %cst_55 {dimension_numbers = #tpu.dot_dimension_numbers<[1], [0], [0], [1], [0, 0, 1, 1], [], []>} : vector<8x32xbf16>, vector<32x32xbf16>, vector<8x32xf32> -> vector<8x32xf32>
    %c0_56 = arith.constant 0 : index
    %c0_57 = arith.constant 0 : index
    %108 = vector.load %arg16[%c0_56, %c0_57] : memref<1x32xf32, #tpu.memory_space<vmem>>, vector<1x32xf32>
    %109 = vector.broadcast %108 : vector<1x32xf32> to vector<8x32xf32>
    %110 = arith.addf %107, %109 : vector<8x32xf32>
    %111 = arith.truncf %110 : vector<8x32xf32> to vector<8x32xbf16>
    %c0_58 = arith.constant 0 : index
    %c0_59 = arith.constant 0 : index
    %c0_60 = arith.constant 0 : index
    %112 = vector.load %arg19[%c0_58, %c0_59, %c0_60] : memref<1x8x32xbf16, #tpu.memory_space<vmem>>, vector<1x8x32xbf16>
    %113 = vector.shape_cast %112 : vector<1x8x32xbf16> to vector<8x32xbf16>
    %114 = vector.shape_cast %111 : vector<8x32xbf16> to vector<1x8x32xbf16>
    tpu.vector_store %arg19[%c0_58, %c0_59, %c0_60], %114 {strides = array<i32>} : memref<1x8x32xbf16, #tpu.memory_space<vmem>>, vector<1x8x32xbf16>,
    return
  }
  func.func @transform_0(%arg0: i32, %arg1: i32) -> (i32, i32, i32) {
    %c0_i32 = arith.constant 0 : i32
    %c0_i32_0 = arith.constant 0 : i32
    return %arg0, %arg1, %c0_i32 : i32, i32, i32
  }
  func.func @transform_1(%arg0: i32, %arg1: i32) -> (i32, i32) {
    %c0_i32 = arith.constant 0 : i32
    %c0_i32_0 = arith.constant 0 : i32
    %c0_i32_1 = arith.constant 0 : i32
    return %c0_i32, %c0_i32_0 : i32, i32
  }
  func.func @transform_2(%arg0: i32, %arg1: i32) -> (i32, i32) {
    %c0_i32 = arith.constant 0 : i32
    %c0_i32_0 = arith.constant 0 : i32
    %c0_i32_1 = arith.constant 0 : i32
    return %c0_i32, %c0_i32_0 : i32, i32
  }
  func.func @transform_3(%arg0: i32, %arg1: i32) -> (i32, i32) {
    %c0_i32 = arith.constant 0 : i32
    %c0_i32_0 = arith.constant 0 : i32
    %c0_i32_1 = arith.constant 0 : i32
    return %c0_i32, %c0_i32_0 : i32, i32
  }
  func.func @transform_4(%arg0: i32, %arg1: i32) -> (i32, i32) {
    %c0_i32 = arith.constant 0 : i32
    %c0_i32_0 = arith.constant 0 : i32
    %c0_i32_1 = arith.constant 0 : i32
    return %c0_i32, %c0_i32_0 : i32, i32
  }
  func.func @transform_5(%arg0: i32, %arg1: i32) -> (i32, i32) {
    %c0_i32 = arith.constant 0 : i32
    %c0_i32_0 = arith.constant 0 : i32
    %c0_i32_1 = arith.constant 0 : i32
    return %c0_i32, %c0_i32_0 : i32, i32
  }
  func.func @transform_6(%arg0: i32, %arg1: i32) -> (i32, i32) {
    %c0_i32 = arith.constant 0 : i32
    %c0_i32_0 = arith.constant 0 : i32
    %c0_i32_1 = arith.constant 0 : i32
    return %c0_i32, %c0_i32_0 : i32, i32
  }
  func.func @transform_7(%arg0: i32, %arg1: i32) -> (i32, i32) {
    %c0_i32 = arith.constant 0 : i32
    %c0_i32_0 = arith.constant 0 : i32
    %c0_i32_1 = arith.constant 0 : i32
    return %c0_i32, %c0_i32_0 : i32, i32
  }
  func.func @transform_8(%arg0: i32, %arg1: i32) -> (i32, i32) {
    %c0_i32 = arith.constant 0 : i32
    %c0_i32_0 = arith.constant 0 : i32
    %c0_i32_1 = arith.constant 0 : i32
    return %c0_i32, %c0_i32_0 : i32, i32
  }
  func.func @transform_9(%arg0: i32, %arg1: i32) -> (i32, i32) {
    %c0_i32 = arith.constant 0 : i32
    %c0_i32_0 = arith.constant 0 : i32
    %c0_i32_1 = arith.constant 0 : i32
    return %c0_i32, %c0_i32_0 : i32, i32
  }
  func.func @transform_10(%arg0: i32, %arg1: i32) -> (i32, i32) {
    %c0_i32 = arith.constant 0 : i32
    %c0_i32_0 = arith.constant 0 : i32
    %c0_i32_1 = arith.constant 0 : i32
    return %c0_i32, %c0_i32_0 : i32, i32
  }
  func.func @transform_11(%arg0: i32, %arg1: i32) -> (i32, i32) {
    %c0_i32 = arith.constant 0 : i32
    %c0_i32_0 = arith.constant 0 : i32
    %c0_i32_1 = arith.constant 0 : i32
    return %c0_i32, %c0_i32_0 : i32, i32
  }
  func.func @transform_12(%arg0: i32, %arg1: i32) -> (i32, i32) {
    %c0_i32 = arith.constant 0 : i32
    %c0_i32_0 = arith.constant 0 : i32
    %c0_i32_1 = arith.constant 0 : i32
    return %c0_i32, %c0_i32_0 : i32, i32
  }
  func.func @transform_13(%arg0: i32, %arg1: i32) -> (i32, i32) {
    %c0_i32 = arith.constant 0 : i32
    %c0_i32_0 = arith.constant 0 : i32
    %c0_i32_1 = arith.constant 0 : i32
    return %c0_i32, %c0_i32_0 : i32, i32
  }
  func.func @transform_14(%arg0: i32, %arg1: i32) -> (i32, i32) {
    %c0_i32 = arith.constant 0 : i32
    %c0_i32_0 = arith.constant 0 : i32
    %c0_i32_1 = arith.constant 0 : i32
    return %c0_i32, %c0_i32_0 : i32, i32
  }
  func.func @transform_15(%arg0: i32, %arg1: i32) -> (i32, i32, i32) {
    %c0_i32 = arith.constant 0 : i32
    %c0_i32_0 = arith.constant 0 : i32
    return %arg0, %c0_i32, %arg1 : i32, i32, i32
  }
  func.func @transform_16(%arg0: i32, %arg1: i32) -> (i32, i32, i32) {
    %c0_i32 = arith.constant 0 : i32
    %c0_i32_0 = arith.constant 0 : i32
    return %arg0, %arg1, %c0_i32 : i32, i32, i32
  }
  func.func @transform_17(%arg0: i32, %arg1: i32) -> (i32, i32, i32) {
    %c0_i32 = arith.constant 0 : i32
    %c0_i32_0 = arith.constant 0 : i32
    return %arg0, %arg1, %c0_i32 : i32, i32, i32
  }
}

module attributes {stable_mosaic.version = 11 : i64} {
  func.func @_pair_kernel(%arg0: i32, %arg1: i32, %arg2: i32, %arg3: memref<1x8x32xbf16, #tpu.memory_space<vmem>>, %arg4: memref<1x8x32xbf16, #tpu.memory_space<vmem>>, %arg5: memref<1x8x8x16xf32, #tpu.memory_space<vmem>>, %arg6: memref<32x16xbf16, #tpu.memory_space<vmem>>, %arg7: memref<32x16xbf16, #tpu.memory_space<vmem>>, %arg8: memref<1x16xf32, #tpu.memory_space<vmem>>, %arg9: memref<4x16xbf16, #tpu.memory_space<vmem>>, %arg10: memref<4x16xbf16, #tpu.memory_space<vmem>>, %arg11: memref<4x1xf32, #tpu.memory_space<vmem>>, %arg12: memref<1x4x8x8xf32, #tpu.memory_space<vmem>>) attributes {dimension_semantics = [#tpu.dimension_semantics<parallel>, #tpu.dimension_semantics<parallel>, #tpu.dimension_semantics<parallel>], iteration_bounds = array<i64: 2, 1, 1>, scalar_prefetch = 0 : i64, scratch_operands = 0 : i64, tpu.core_type = #tpu.core_type<tc>, window_params = [{transform_indices = @transform_0, window_bounds = array<i64: 1, 8, 32>}, {transform_indices = @transform_1, window_bounds = array<i64: 1, 8, 32>}, {transform_indices = @transform_2, window_bounds = array<i64: 1, 8, 8, 16>}, {pipeline_mode = #tpu.pipeline_mode<synchronous>, transform_indices = @transform_3, window_bounds = array<i64: 32, 16>}, {pipeline_mode = #tpu.pipeline_mode<synchronous>, transform_indices = @transform_4, window_bounds = array<i64: 32, 16>}, {pipeline_mode = #tpu.pipeline_mode<synchronous>, transform_indices = @transform_5, window_bounds = array<i64: 1, 16>}, {pipeline_mode = #tpu.pipeline_mode<synchronous>, transform_indices = @transform_6, window_bounds = array<i64: 4, 16>}, {pipeline_mode = #tpu.pipeline_mode<synchronous>, transform_indices = @transform_7, window_bounds = array<i64: 4, 16>}, {pipeline_mode = #tpu.pipeline_mode<synchronous>, transform_indices = @transform_8, window_bounds = array<i64: 4, 1>}, {transform_indices = @transform_9, window_bounds = array<i64: 1, 4, 8, 8>}]} {
    %c0 = arith.constant 0 : index
    %c0_0 = arith.constant 0 : index
    %c0_1 = arith.constant 0 : index
    %0 = vector.load %arg3[%c0, %c0_0, %c0_1] : memref<1x8x32xbf16, #tpu.memory_space<vmem>>, vector<1x8x32xbf16>
    %1 = vector.shape_cast %0 : vector<1x8x32xbf16> to vector<8x32xbf16>
    %c0_2 = arith.constant 0 : index
    %c0_3 = arith.constant 0 : index
    %2 = vector.load %arg7[%c0_2, %c0_3] : memref<32x16xbf16, #tpu.memory_space<vmem>>, vector<32x16xbf16>
    %cst = arith.constant dense<0.000000e+00> : vector<8x16xf32>
    %3 = tpu.matmul %1, %2, %cst {dimension_numbers = #tpu.dot_dimension_numbers<[1], [0], [0], [1], [0, 0, 1, 1], [], []>} : vector<8x32xbf16>, vector<32x16xbf16>, vector<8x16xf32> -> vector<8x16xf32>
    %c0_4 = arith.constant 0 : index
    %c0_5 = arith.constant 0 : index
    %4 = vector.load %arg8[%c0_4, %c0_5] : memref<1x16xf32, #tpu.memory_space<vmem>>, vector<1x16xf32>
    %5 = vector.broadcast %4 : vector<1x16xf32> to vector<8x16xf32>
    %6 = arith.addf %3, %5 : vector<8x16xf32>
    %c0_6 = arith.constant 0 : index
    %c0_7 = arith.constant 0 : index
    %7 = vector.load %arg11[%c0_6, %c0_7] : memref<4x1xf32, #tpu.memory_space<vmem>>, vector<4x1xf32>
    %c0_i32 = arith.constant 0 : i32
    %c1_i32 = arith.constant 1 : i32
    %8 = arith.muli %c0_i32, %c1_i32 : i32
    %c0_i32_8 = arith.constant 0 : i32
    %9 = arith.addi %c0_i32_8, %8 : i32
    %c8_i32 = arith.constant 8 : i32
    %10 = arith.muli %9, %c8_i32 : i32
    %11 = tpu.assume_multiple %10, 8 : i32
    %c0_9 = arith.constant 0 : index
    %12 = arith.index_cast %11 : i32 to index
    %c0_10 = arith.constant 0 : index
    %13 = vector.load %arg4[%c0_9, %12, %c0_10] : memref<1x8x32xbf16, #tpu.memory_space<vmem>>, vector<1x8x32xbf16>
    %14 = vector.shape_cast %13 : vector<1x8x32xbf16> to vector<8x32xbf16>
    %c0_11 = arith.constant 0 : index
    %c0_12 = arith.constant 0 : index
    %15 = vector.load %arg7[%c0_11, %c0_12] : memref<32x16xbf16, #tpu.memory_space<vmem>>, vector<32x16xbf16>
    %cst_13 = arith.constant dense<0.000000e+00> : vector<8x16xf32>
    %16 = tpu.matmul %14, %15, %cst_13 {dimension_numbers = #tpu.dot_dimension_numbers<[1], [0], [0], [1], [0, 0, 1, 1], [], []>} : vector<8x32xbf16>, vector<32x16xbf16>, vector<8x16xf32> -> vector<8x16xf32>
    %17 = vector.shape_cast %14 : vector<8x32xbf16> to vector<8x1x32xbf16>
    %18 = vector.shape_cast %1 : vector<8x32xbf16> to vector<1x8x32xbf16>
    %19 = vector.broadcast %17 : vector<8x1x32xbf16> to vector<8x8x32xbf16>
    %20 = vector.broadcast %18 : vector<1x8x32xbf16> to vector<8x8x32xbf16>
    %21 = arith.mulf %19, %20 : vector<8x8x32xbf16>
    %22 = vector.shape_cast %21 : vector<8x8x32xbf16> to vector<64x32xbf16>
    %c0_14 = arith.constant 0 : index
    %c0_15 = arith.constant 0 : index
    %23 = vector.load %arg6[%c0_14, %c0_15] : memref<32x16xbf16, #tpu.memory_space<vmem>>, vector<32x16xbf16>
    %cst_16 = arith.constant dense<0.000000e+00> : vector<64x16xf32>
    %24 = tpu.matmul %22, %23, %cst_16 {dimension_numbers = #tpu.dot_dimension_numbers<[1], [0], [0], [1], [0, 0, 1, 1], [], []>} : vector<64x32xbf16>, vector<32x16xbf16>, vector<64x16xf32> -> vector<64x16xf32>
    %25 = vector.shape_cast %24 : vector<64x16xf32> to vector<8x8x16xf32>
    %26 = vector.shape_cast %6 : vector<8x16xf32> to vector<1x8x16xf32>
    %27 = vector.broadcast %26 : vector<1x8x16xf32> to vector<8x8x16xf32>
    %28 = arith.addf %25, %27 : vector<8x8x16xf32>
    %29 = vector.shape_cast %16 : vector<8x16xf32> to vector<8x1x16xf32>
    %30 = vector.broadcast %29 : vector<8x1x16xf32> to vector<8x8x16xf32>
    %31 = arith.subf %28, %30 : vector<8x8x16xf32>
    %cst_17 = arith.constant 5.000000e-01 : f32
    %32 = vector.broadcast %cst_17 : f32 to vector<8x8x16xf32>
    %33 = arith.mulf %32, %31 : vector<8x8x16xf32>
    %34 = arith.mulf %31, %31 : vector<8x8x16xf32>
    %35 = arith.mulf %34, %31 : vector<8x8x16xf32>
    %cst_18 = arith.constant 4.471500e-02 : f32
    %36 = vector.broadcast %cst_18 : f32 to vector<8x8x16xf32>
    %37 = arith.mulf %36, %35 : vector<8x8x16xf32>
    %38 = arith.addf %31, %37 : vector<8x8x16xf32>
    %cst_19 = arith.constant 0.797884583 : f32
    %39 = vector.broadcast %cst_19 : f32 to vector<8x8x16xf32>
    %40 = arith.mulf %39, %38 : vector<8x8x16xf32>
    %41 = math.tanh %40 : vector<8x8x16xf32>
    %cst_20 = arith.constant 1.000000e+00 : f32
    %42 = vector.broadcast %cst_20 : f32 to vector<8x8x16xf32>
    %43 = arith.addf %42, %41 : vector<8x8x16xf32>
    %44 = arith.mulf %33, %43 : vector<8x8x16xf32>
    %45 = arith.truncf %44 : vector<8x8x16xf32> to vector<8x8x16xbf16>
    %46 = vector.shape_cast %45 : vector<8x8x16xbf16> to vector<64x16xbf16>
    %c0_21 = arith.constant 0 : index
    %47 = arith.index_cast %11 : i32 to index
    %c0_22 = arith.constant 0 : index
    %c0_23 = arith.constant 0 : index
    %48 = vector.load %arg5[%c0_21, %47, %c0_22, %c0_23] : memref<1x8x8x16xf32, #tpu.memory_space<vmem>>, vector<1x8x8x16xf32>
    %49 = vector.shape_cast %48 : vector<1x8x8x16xf32> to vector<8x8x16xf32>
    %50 = arith.truncf %49 : vector<8x8x16xf32> to vector<8x8x16xbf16>
    %51 = vector.shape_cast %50 : vector<8x8x16xbf16> to vector<64x16xbf16>
    %c0_24 = arith.constant 0 : index
    %c0_25 = arith.constant 0 : index
    %52 = vector.load %arg9[%c0_24, %c0_25] : memref<4x16xbf16, #tpu.memory_space<vmem>>, vector<4x16xbf16>
    %cst_26 = arith.constant dense<0.000000e+00> : vector<4x64xf32>
    %53 = tpu.matmul %52, %46, %cst_26 {dimension_numbers = #tpu.dot_dimension_numbers<[1], [1], [0], [0], [0, 0, 1, 0], [], []>} : vector<4x16xbf16>, vector<64x16xbf16>, vector<4x64xf32> -> vector<4x64xf32>
    %c0_27 = arith.constant 0 : index
    %c0_28 = arith.constant 0 : index
    %54 = vector.load %arg10[%c0_27, %c0_28] : memref<4x16xbf16, #tpu.memory_space<vmem>>, vector<4x16xbf16>
    %cst_29 = arith.constant dense<0.000000e+00> : vector<4x64xf32>
    %55 = tpu.matmul %54, %51, %cst_29 {dimension_numbers = #tpu.dot_dimension_numbers<[1], [1], [0], [0], [0, 0, 1, 0], [], []>} : vector<4x16xbf16>, vector<64x16xbf16>, vector<4x64xf32> -> vector<4x64xf32>
    %56 = arith.addf %53, %55 : vector<4x64xf32>
    %57 = vector.broadcast %7 : vector<4x1xf32> to vector<4x64xf32>
    %58 = arith.addf %56, %57 : vector<4x64xf32>
    %59 = vector.shape_cast %58 : vector<4x64xf32> to vector<4x8x8xf32>
    %c0_30 = arith.constant 0 : index
    %c0_31 = arith.constant 0 : index
    %60 = arith.index_cast %11 : i32 to index
    %c0_32 = arith.constant 0 : index
    %61 = vector.load %arg12[%c0_30, %c0_31, %60, %c0_32] : memref<1x4x8x8xf32, #tpu.memory_space<vmem>>, vector<1x4x8x8xf32>
    %62 = vector.shape_cast %61 : vector<1x4x8x8xf32> to vector<4x8x8xf32>
    %63 = vector.shape_cast %59 : vector<4x8x8xf32> to vector<1x4x8x8xf32>
    tpu.vector_store %arg12[%c0_30, %c0_31, %60, %c0_32], %63 {strides = array<i32>} : memref<1x4x8x8xf32, #tpu.memory_space<vmem>>, vector<1x4x8x8xf32>,
    %c1_i32_33 = arith.constant 1 : i32
    return
  }
  func.func @transform_0(%arg0: i32, %arg1: i32, %arg2: i32) -> (i32, i32, i32) {
    %c0_i32 = arith.constant 0 : i32
    %c0_i32_0 = arith.constant 0 : i32
    return %arg0, %arg2, %c0_i32 : i32, i32, i32
  }
  func.func @transform_1(%arg0: i32, %arg1: i32, %arg2: i32) -> (i32, i32, i32) {
    %c0_i32 = arith.constant 0 : i32
    %c0_i32_0 = arith.constant 0 : i32
    return %arg0, %arg1, %c0_i32 : i32, i32, i32
  }
  func.func @transform_2(%arg0: i32, %arg1: i32, %arg2: i32) -> (i32, i32, i32, i32) {
    %c0_i32 = arith.constant 0 : i32
    %c0_i32_0 = arith.constant 0 : i32
    return %arg0, %arg1, %arg2, %c0_i32 : i32, i32, i32, i32
  }
  func.func @transform_3(%arg0: i32, %arg1: i32, %arg2: i32) -> (i32, i32) {
    %c0_i32 = arith.constant 0 : i32
    %c0_i32_0 = arith.constant 0 : i32
    %c0_i32_1 = arith.constant 0 : i32
    return %c0_i32, %c0_i32_0 : i32, i32
  }
  func.func @transform_4(%arg0: i32, %arg1: i32, %arg2: i32) -> (i32, i32) {
    %c0_i32 = arith.constant 0 : i32
    %c0_i32_0 = arith.constant 0 : i32
    %c0_i32_1 = arith.constant 0 : i32
    return %c0_i32, %c0_i32_0 : i32, i32
  }
  func.func @transform_5(%arg0: i32, %arg1: i32, %arg2: i32) -> (i32, i32) {
    %c0_i32 = arith.constant 0 : i32
    %c0_i32_0 = arith.constant 0 : i32
    %c0_i32_1 = arith.constant 0 : i32
    return %c0_i32, %c0_i32_0 : i32, i32
  }
  func.func @transform_6(%arg0: i32, %arg1: i32, %arg2: i32) -> (i32, i32) {
    %c0_i32 = arith.constant 0 : i32
    %c0_i32_0 = arith.constant 0 : i32
    %c0_i32_1 = arith.constant 0 : i32
    return %c0_i32, %c0_i32_0 : i32, i32
  }
  func.func @transform_7(%arg0: i32, %arg1: i32, %arg2: i32) -> (i32, i32) {
    %c0_i32 = arith.constant 0 : i32
    %c0_i32_0 = arith.constant 0 : i32
    %c0_i32_1 = arith.constant 0 : i32
    return %c0_i32, %c0_i32_0 : i32, i32
  }
  func.func @transform_8(%arg0: i32, %arg1: i32, %arg2: i32) -> (i32, i32) {
    %c0_i32 = arith.constant 0 : i32
    %c0_i32_0 = arith.constant 0 : i32
    %c0_i32_1 = arith.constant 0 : i32
    return %c0_i32, %c0_i32_0 : i32, i32
  }
  func.func @transform_9(%arg0: i32, %arg1: i32, %arg2: i32) -> (i32, i32, i32, i32) {
    %c0_i32 = arith.constant 0 : i32
    %c0_i32_0 = arith.constant 0 : i32
    return %arg0, %c0_i32, %arg1, %arg2 : i32, i32, i32, i32
  }
}

</mosaic_0001>

<llo_original>
// kernel: _lambda_.2
$region0: #{_lambda_.2}
  #allocation0 [shape = 'u32[]', space=smem, size = 0x4, offset = 0x4, fixed_abs, tag = 'smem constant byte address 0x4 - core index']
  #allocation1 [shape = 'u32[144,128]{1,0:T(1,128)}', space=vmem, size = 0x12000, scoped, tag = 'internal scratch']
  %s0 = inlined_call_operand.vmem [shape: f32[2,8,32], index: 0, kind: input, shape index: {}]
  %s1 = inlined_call_operand.vmem [shape: bf16[32,32], index: 1, kind: input, shape index: {}]
  %s2 = inlined_call_operand.vmem [shape: f32[1,32], index: 2, kind: input, shape index: {}, may-alias: {2,4,8,10,12,14}]
  %s3 = inlined_call_operand.vmem [shape: f32[1,32], index: 3, kind: input, shape index: {}, may-alias: {3,9}]
  %s4 = inlined_call_operand.vmem [shape: f32[1,32], index: 4, kind: input, shape index: {}, may-alias: {2,4,8,10,12,14}]
  %s5 = inlined_call_operand.hbm [shape: bf16[8,32], index: 5, kind: input, shape index: {}]
  %s6 = inlined_call_operand.vmem [shape: f32[8,1], index: 6, kind: input, shape index: {}]
  %s7 = inlined_call_operand.vmem [shape: bf16[32,32], index: 7, kind: input, shape index: {}]
  %s8 = inlined_call_operand.vmem [shape: f32[1,32], index: 8, kind: input, shape index: {}, may-alias: {2,4,8,10,12,14}]
  %s9 = inlined_call_operand.vmem [shape: f32[1,32], index: 9, kind: input, shape index: {}, may-alias: {3,9}]
  %s10 = inlined_call_operand.vmem [shape: f32[1,32], index: 10, kind: input, shape index: {}, may-alias: {2,4,8,10,12,14}]
  %s11 = inlined_call_operand.vmem [shape: bf16[32,32], index: 11, kind: input, shape index: {}]
  %s12 = inlined_call_operand.vmem [shape: f32[1,32], index: 12, kind: input, shape index: {}, may-alias: {2,4,8,10,12,14}]
  %s13 = inlined_call_operand.vmem [shape: bf16[32,32], index: 13, kind: input, shape index: {}]
  %s14 = inlined_call_operand.vmem [shape: f32[1,32], index: 14, kind: input, shape index: {}, may-alias: {2,4,8,10,12,14}]
  %s15 = inlined_call_operand.vmem [shape: f32[2,8,8], index: 15, kind: output, shape index: {0}]
  %s16 = inlined_call_operand.vmem [shape: bf16[2,8,32], index: 16, kind: output, shape index: {1}]
  %s17 = inlined_call_operand.vmem [shape: bf16[2,8,32], index: 17, kind: output, shape index: {2}]
  %18 = xla_tuple %s15, %s16, %s17
  %s19 = sld [smem:[#allocation0]]
  $region113: #{_lambda_.2} parent=0
    _
  %s21 = ssub.s32 1, %s19
  %s22 = scalar_select 0, %s21, %s19
  $region1: #{_lambda_.2} parent=0
    #allocation2 [shape = 'u8[2048]{0}', space=vmem, size = 0x800, scoped, tag = 'input window, operand 5, single buffered']
    #allocation3 [shape = 's32[2]{0}', space=sflag, size = 0x8, scoped, tag = 'scoped memory for _lambda_.2']
    %23 = vsyncpa [#allocation3], 0
    loop: start=0, step=1, limit=4
    $region2: #{_lambda_.2} parent=1 // loop_pre_header
      _
    $region3: #{_lambda_.2} parent=1 // loop_header
      %s25 = sphi 0, %s29
      %p26 = scmp.ge.s32.totalorder %s25, 4
      %s32 = sphi 0, %s44
      %s33 = sphi 0, %s40
      %s34 = sphi 0, %s32
      %s35 = sphi 0, %s33
      %s36 = sphi 0, %s34
      %s37 = sphi 0, %s35
      %s49 = sphi 0, %s51
      %s52 = sphi 0, %s49
      %s53 = sphi 0, %s52
      %s69 = sphi 0, %s53
      %s73 = sphi 0, %s73
      %s75 = sphi 0, %s73
      %s76 = sphi 0, %s75
      %s90 = sphi 0, %s76
      %s94 = sphi 0, %s94
      %s96 = sphi 0, %s94
      %s97 = sphi 0, %s96
      %s111 = sphi 0, %s97
      %s115 = sphi 0, %s115
      %s117 = sphi 0, %s115
      %s118 = sphi 0, %s117
      %s132 = sphi 0, %s118
      %s136 = sphi 0, %s136
      %s138 = sphi 0, %s136
      %s139 = sphi 0, %s138
      %s153 = sphi 0, %s139
      %s157 = sphi 0, %s157
      %s159 = sphi 0, %s157
      %s160 = sphi 0, %s159
      %s174 = sphi 0, %s160
      %s178 = sphi 0, %s178
      %s180 = sphi 0, %s178
      %s181 = sphi 0, %s180
      %s195 = sphi 0, %s181
      %s199 = sphi 0, %s199
      %s201 = sphi 0, %s199
      %s202 = sphi 0, %s201
      %s216 = sphi 0, %s202
      %s220 = sphi 0, %s220
      %s222 = sphi 0, %s220
      %s223 = sphi 0, %s222
      %s237 = sphi 0, %s223
      %s241 = sphi 0, %s241
      %s243 = sphi 0, %s241
      %s244 = sphi 0, %s243
      %s258 = sphi 0, %s244
      %s262 = sphi 0, %s262
      %s264 = sphi 0, %s262
      %s265 = sphi 0, %s264
      %s279 = sphi 0, %s265
      %s283 = sphi 0, %s283
      %s285 = sphi 0, %s283
      %s286 = sphi 0, %s285
      %s300 = sphi 0, %s286
      %s304 = sphi 0, %s304
      %s306 = sphi 0, %s304
      %s307 = sphi 0, %s306
      %s321 = sphi 0, %s307
      %s325 = sphi 0, %s325
      %s327 = sphi 0, %s325
      %s328 = sphi 0, %s327
      %s342 = sphi 0, %s328
      %s346 = sphi 0, %s346
      %s348 = sphi 0, %s346
      %s349 = sphi 0, %s348
      %s363 = sphi 0, %s349
      %s371 = sphi 0, %s373
      %s374 = sphi 0, %s371
      %s375 = sphi 0, %s374
      %s391 = sphi 0, %s375
      %s399 = sphi 0, %s401
      %s402 = sphi 0, %s399
      %s403 = sphi 0, %s402
      %s419 = sphi 0, %s403
      %s427 = sphi 0, %s429
      %s430 = sphi 0, %s427
      %s431 = sphi 0, %s430
      %s447 = sphi 0, %s431
    $region4: #{_lambda_.2} parent=1 // loop_header_branch
      %28 = sbr.rel (%p26) target = $region8
    $region5: #{_lambda_.2} parent=1 // loop_body
      %s30 = ssub.s32 %s25, 1
      %s31 = ssub.s32 %s25, 2
      %s38 = sadd.s32 1, %s33
      %p39 = scmp.ge.s32.totalorder %s38, 1
      %s40 = scalar_select %p39, 0, %s38
      %s41 = sadd.s32 1, %s32
      %s42 = scalar_select %p39, %s41, %s32
      %p43 = scmp.ge.s32.totalorder %s42, 2
      %s44 = scalar_select %p43, 0, %s42
      %s45 = ssub.s32 %s32, %s44
      %s46 = ssub.s32 %s33, %s40
      %s47 = sor.u32 %s45, %s46
      %p48 = scmp.eq.s32.totalorder %s47, 0
      %s50 = sadd.s32 %s49, 1
      %s51 = scalar_select %p48, %s49, %s50
      %p54 = pneg %p48
      %p55 = scmp.eq.s32.totalorder %s25, 1
      %p56 = por %p54, %p55
      %p57 = scmp.ne.s32.totalorder %s49, %s52
      %p58 = scmp.eq.s32.totalorder %s25, 0
      %p59 = por %p57, %p58
      %p60 = scmp.ne.s32.totalorder %s49, %s52
      %p61 = scmp.eq.s32.totalorder %s30, 1
      %p62 = por %p60, %p61
      %p63 = scmp.ne.s32.totalorder %s52, %s53
      %p64 = scmp.eq.s32.totalorder %s30, 0
      %p65 = por %p63, %p64
      %p66 = scmp.ne.s32.totalorder %s52, %s53
      %p67 = scmp.eq.s32.totalorder %s31, 1
      %p68 = por %p66, %p67
      %p70 = scmp.ne.s32.totalorder %s53, %s69
      %p71 = scmp.eq.s32.totalorder %s31, 0
      %p72 = por %p70, %p71
      %s74 = sadd.s32 %s73, 1
      %p77 = scmp.eq.s32.totalorder %s25, 1
      %p78 = scmp.ne.s32.totalorder %s73, %s75
      %p79 = scmp.eq.s32.totalorder %s25, 0
      %p80 = por %p78, %p79
      %p81 = scmp.ne.s32.totalorder %s73, %s75
      %p82 = scmp.eq.s32.totalorder %s30, 1
      %p83 = por %p81, %p82
      %p84 = scmp.ne.s32.totalorder %s75, %s76
      %p85 = scmp.eq.s32.totalorder %s30, 0
      %p86 = por %p84, %p85
      %p87 = scmp.ne.s32.totalorder %s75, %s76
      %p88 = scmp.eq.s32.totalorder %s31, 1
      %p89 = por %p87, %p88
      %p91 = scmp.ne.s32.totalorder %s76, %s90
      %p92 = scmp.eq.s32.totalorder %s31, 0
      %p93 = por %p91, %p92
      %s95 = sadd.s32 %s94, 1
      %p98 = scmp.eq.s32.totalorder %s25, 1
      %p99 = scmp.ne.s32.totalorder %s94, %s96
      %p100 = scmp.eq.s32.totalorder %s25, 0
      %p101 = por %p99, %p100
      %p102 = scmp.ne.s32.totalorder %s94, %s96
      %p103 = scmp.eq.s32.totalorder %s30, 1
      %p104 = por %p102, %p103
      %p105 = scmp.ne.s32.totalorder %s96, %s97
      %p106 = scmp.eq.s32.totalorder %s30, 0
      %p107 = por %p105, %p106
      %p108 = scmp.ne.s32.totalorder %s96, %s97
      %p109 = scmp.eq.s32.totalorder %s31, 1
      %p110 = por %p108, %p109
      %p112 = scmp.ne.s32.totalorder %s97, %s111
      %p113 = scmp.eq.s32.totalorder %s31, 0
      %p114 = por %p112, %p113
      %s116 = sadd.s32 %s115, 1
      %p119 = scmp.eq.s32.totalorder %s25, 1
      %p120 = scmp.ne.s32.totalorder %s115, %s117
      %p121 = scmp.eq.s32.totalorder %s25, 0
      %p122 = por %p120, %p121
      %p123 = scmp.ne.s32.totalorder %s115, %s117
      %p124 = scmp.eq.s32.totalorder %s30, 1
      %p125 = por %p123, %p124
      %p126 = scmp.ne.s32.totalorder %s117, %s118
      %p127 = scmp.eq.s32.totalorder %s30, 0
      %p128 = por %p126, %p127
      %p129 = scmp.ne.s32.totalorder %s117, %s118
      %p130 = scmp.eq.s32.totalorder %s31, 1
      %p131 = por %p129, %p130
      %p133 = scmp.ne.s32.totalorder %s118, %s132
      %p134 = scmp.eq.s32.totalorder %s31, 0
      %p135 = por %p133, %p134
      %s137 = sadd.s32 %s136, 1
      %p140 = scmp.eq.s32.totalorder %s25, 1
      %p141 = scmp.ne.s32.totalorder %s136, %s138
      %p142 = scmp.eq.s32.totalorder %s25, 0
      %p143 = por %p141, %p142
      %p144 = scmp.ne.s32.totalorder %s136, %s138
      %p145 = scmp.eq.s32.totalorder %s30, 1
      %p146 = por %p144, %p145
      %p147 = scmp.ne.s32.totalorder %s138, %s139
      %p148 = scmp.eq.s32.totalorder %s30, 0
      %p149 = por %p147, %p148
      %p150 = scmp.ne.s32.totalorder %s138, %s139
      %p151 = scmp.eq.s32.totalorder %s31, 1
      %p152 = por %p150, %p151
      %p154 = scmp.ne.s32.totalorder %s139, %s153
      %p155 = scmp.eq.s32.totalorder %s31, 0
      %p156 = por %p154, %p155
      %s158 = sadd.s32 %s157, 1
      %p161 = scmp.eq.s32.totalorder %s25, 1
      %p162 = scmp.ne.s32.totalorder %s157, %s159
      %p163 = scmp.eq.s32.totalorder %s25, 0
      %p164 = por %p162, %p163
      %p165 = scmp.ne.s32.totalorder %s157, %s159
      %p166 = scmp.eq.s32.totalorder %s30, 1
      %p167 = por %p165, %p166
      %p168 = scmp.ne.s32.totalorder %s159, %s160
      %p169 = scmp.eq.s32.totalorder %s30, 0
      %p170 = por %p168, %p169
      %p171 = scmp.ne.s32.totalorder %s159, %s160
      %p172 = scmp.eq.s32.totalorder %s31, 1
      %p173 = por %p171, %p172
      %p175 = scmp.ne.s32.totalorder %s160, %s174
      %p176 = scmp.eq.s32.totalorder %s31, 0
      %p177 = por %p175, %p176
      %s179 = sadd.s32 %s178, 1
      %p182 = scmp.eq.s32.totalorder %s25, 1
      %p183 = scmp.ne.s32.totalorder %s178, %s180
      %p184 = scmp.eq.s32.totalorder %s25, 0
      %p185 = por %p183, %p184
      %p186 = scmp.ne.s32.totalorder %s178, %s180
      %p187 = scmp.eq.s32.totalorder %s30, 1
      %p188 = por %p186, %p187
      %p189 = scmp.ne.s32.totalorder %s180, %s181
      %p190 = scmp.eq.s32.totalorder %s30, 0
      %p191 = por %p189, %p190
      %p192 = scmp.ne.s32.totalorder %s180, %s181
      %p193 = scmp.eq.s32.totalorder %s31, 1
      %p194 = por %p192, %p193
      %p196 = scmp.ne.s32.totalorder %s181, %s195
      %p197 = scmp.eq.s32.totalorder %s31, 0
      %p198 = por %p196, %p197
      %s200 = sadd.s32 %s199, 1
      %p203 = scmp.eq.s32.totalorder %s25, 1
      %p204 = scmp.ne.s32.totalorder %s199, %s201
      %p205 = scmp.eq.s32.totalorder %s25, 0
      %p206 = por %p204, %p205
      %p207 = scmp.ne.s32.totalorder %s199, %s201
      %p208 = scmp.eq.s32.totalorder %s30, 1
      %p209 = por %p207, %p208
      %p210 = scmp.ne.s32.totalorder %s201, %s202
      %p211 = scmp.eq.s32.totalorder %s30, 0
      %p212 = por %p210, %p211
      %p213 = scmp.ne.s32.totalorder %s201, %s202
      %p214 = scmp.eq.s32.totalorder %s31, 1
      %p215 = por %p213, %p214
      %p217 = scmp.ne.s32.totalorder %s202, %s216
      %p218 = scmp.eq.s32.totalorder %s31, 0
      %p219 = por %p217, %p218
      %s221 = sadd.s32 %s220, 1
      %p224 = scmp.eq.s32.totalorder %s25, 1
      %p225 = scmp.ne.s32.totalorder %s220, %s222
      %p226 = scmp.eq.s32.totalorder %s25, 0
      %p227 = por %p225, %p226
      %p228 = scmp.ne.s32.totalorder %s220, %s222
      %p229 = scmp.eq.s32.totalorder %s30, 1
      %p230 = por %p228, %p229
      %p231 = scmp.ne.s32.totalorder %s222, %s223
      %p232 = scmp.eq.s32.totalorder %s30, 0
      %p233 = por %p231, %p232
      %p234 = scmp.ne.s32.totalorder %s222, %s223
      %p235 = scmp.eq.s32.totalorder %s31, 1
      %p236 = por %p234, %p235
      %p238 = scmp.ne.s32.totalorder %s223, %s237
      %p239 = scmp.eq.s32.totalorder %s31, 0
      %p240 = por %p238, %p239
      %s242 = sadd.s32 %s241, 1
      %p245 = scmp.eq.s32.totalorder %s25, 1
      %p246 = scmp.ne.s32.totalorder %s241, %s243
      %p247 = scmp.eq.s32.totalorder %s25, 0
      %p248 = por %p246, %p247
      %p249 = scmp.ne.s32.totalorder %s241, %s243
      %p250 = scmp.eq.s32.totalorder %s30, 1
      %p251 = por %p249, %p250
      %p252 = scmp.ne.s32.totalorder %s243, %s244
      %p253 = scmp.eq.s32.totalorder %s30, 0
      %p254 = por %p252, %p253
      %p255 = scmp.ne.s32.totalorder %s243, %s244
      %p256 = scmp.eq.s32.totalorder %s31, 1
      %p257 = por %p255, %p256
      %p259 = scmp.ne.s32.totalorder %s244, %s258
      %p260 = scmp.eq.s32.totalorder %s31, 0
      %p261 = por %p259, %p260
      %s263 = sadd.s32 %s262, 1
      %p266 = scmp.eq.s32.totalorder %s25, 1
      %p267 = scmp.ne.s32.totalorder %s262, %s264
      %p268 = scmp.eq.s32.totalorder %s25, 0
      %p269 = por %p267, %p268
      %p270 = scmp.ne.s32.totalorder %s262, %s264
      %p271 = scmp.eq.s32.totalorder %s30, 1
      %p272 = por %p270, %p271
      %p273 = scmp.ne.s32.totalorder %s264, %s265
      %p274 = scmp.eq.s32.totalorder %s30, 0
      %p275 = por %p273, %p274
      %p276 = scmp.ne.s32.totalorder %s264, %s265
      %p277 = scmp.eq.s32.totalorder %s31, 1
      %p278 = por %p276, %p277
      %p280 = scmp.ne.s32.totalorder %s265, %s279
      %p281 = scmp.eq.s32.totalorder %s31, 0
      %p282 = por %p280, %p281
      %s284 = sadd.s32 %s283, 1
      %p287 = scmp.eq.s32.totalorder %s25, 1
      %p288 = scmp.ne.s32.totalorder %s283, %s285
      %p289 = scmp.eq.s32.totalorder %s25, 0
      %p290 = por %p288, %p289
      %p291 = scmp.ne.s32.totalorder %s283, %s285
      %p292 = scmp.eq.s32.totalorder %s30, 1
      %p293 = por %p291, %p292
      %p294 = scmp.ne.s32.totalorder %s285, %s286
      %p295 = scmp.eq.s32.totalorder %s30, 0
      %p296 = por %p294, %p295
      %p297 = scmp.ne.s32.totalorder %s285, %s286
      %p298 = scmp.eq.s32.totalorder %s31, 1
      %p299 = por %p297, %p298
      %p301 = scmp.ne.s32.totalorder %s286, %s300
      %p302 = scmp.eq.s32.totalorder %s31, 0
      %p303 = por %p301, %p302
      %s305 = sadd.s32 %s304, 1
      %p308 = scmp.eq.s32.totalorder %s25, 1
      %p309 = scmp.ne.s32.totalorder %s304, %s306
      %p310 = scmp.eq.s32.totalorder %s25, 0
      %p311 = por %p309, %p310
      %p312 = scmp.ne.s32.totalorder %s304, %s306
      %p313 = scmp.eq.s32.totalorder %s30, 1
      %p314 = por %p312, %p313
      %p315 = scmp.ne.s32.totalorder %s306, %s307
      %p316 = scmp.eq.s32.totalorder %s30, 0
      %p317 = por %p315, %p316
      %p318 = scmp.ne.s32.totalorder %s306, %s307
      %p319 = scmp.eq.s32.totalorder %s31, 1
      %p320 = por %p318, %p319
      %p322 = scmp.ne.s32.totalorder %s307, %s321
      %p323 = scmp.eq.s32.totalorder %s31, 0
      %p324 = por %p322, %p323
      %s326 = sadd.s32 %s325, 1
      %p329 = scmp.eq.s32.totalorder %s25, 1
      %p330 = scmp.ne.s32.totalorder %s325, %s327
      %p331 = scmp.eq.s32.totalorder %s25, 0
      %p332 = por %p330, %p331
      %p333 = scmp.ne.s32.totalorder %s325, %s327
      %p334 = scmp.eq.s32.totalorder %s30, 1
      %p335 = por %p333, %p334
      %p336 = scmp.ne.s32.totalorder %s327, %s328
      %p337 = scmp.eq.s32.totalorder %s30, 0
      %p338 = por %p336, %p337
      %p339 = scmp.ne.s32.totalorder %s327, %s328
      %p340 = scmp.eq.s32.totalorder %s31, 1
      %p341 = por %p339, %p340
      %p343 = scmp.ne.s32.totalorder %s328, %s342
      %p344 = scmp.eq.s32.totalorder %s31, 0
      %p345 = por %p343, %p344
      %s347 = sadd.s32 %s346, 1
      %p350 = scmp.eq.s32.totalorder %s25, 1
      %p351 = scmp.ne.s32.totalorder %s346, %s348
      %p352 = scmp.eq.s32.totalorder %s25, 0
      %p353 = por %p351, %p352
      %p354 = scmp.ne.s32.totalorder %s346, %s348
      %p355 = scmp.eq.s32.totalorder %s30, 1
      %p356 = por %p354, %p355
      %p357 = scmp.ne.s32.totalorder %s348, %s349
      %p358 = scmp.eq.s32.totalorder %s30, 0
      %p359 = por %p357, %p358
      %p360 = scmp.ne.s32.totalorder %s348, %s349
      %p361 = scmp.eq.s32.totalorder %s31, 1
      %p362 = por %p360, %p361
      %p364 = scmp.ne.s32.totalorder %s349, %s363
      %p365 = scmp.eq.s32.totalorder %s31, 0
      %p366 = por %p364, %p365
      %s367 = ssub.s32 %s32, %s44
      %s368 = ssub.s32 %s33, %s40
      %s369 = sor.u32 %s367, %s368
      %p370 = scmp.eq.s32.totalorder %s369, 0
      %s372 = sadd.s32 %s371, 1
      %s373 = scalar_select %p370, %s371, %s372
      %p376 = pneg %p370
      %p377 = scmp.eq.s32.totalorder %s25, 1
      %p378 = por %p376, %p377
      %p379 = scmp.ne.s32.totalorder %s371, %s374
      %p380 = scmp.eq.s32.totalorder %s25, 0
      %p381 = por %p379, %p380
      %p382 = scmp.ne.s32.totalorder %s371, %s374
      %p383 = scmp.eq.s32.totalorder %s30, 1
      %p384 = por %p382, %p383
      %p385 = scmp.ne.s32.totalorder %s374, %s375
      %p386 = scmp.eq.s32.totalorder %s30, 0
      %p387 = por %p385, %p386
      %p388 = scmp.ne.s32.totalorder %s374, %s375
      %p389 = scmp.eq.s32.totalorder %s31, 1
      %p390 = por %p388, %p389
      %p392 = scmp.ne.s32.totalorder %s375, %s391
      %p393 = scmp.eq.s32.totalorder %s31, 0
      %p394 = por %p392, %p393
      %s395 = ssub.s32 %s32, %s44
      %s396 = ssub.s32 %s33, %s40
      %s397 = sor.u32 %s395, %s396
      %p398 = scmp.eq.s32.totalorder %s397, 0
      %s400 = sadd.s32 %s399, 1
      %s401 = scalar_select %p398, %s399, %s400
      %p404 = pneg %p398
      %p405 = scmp.eq.s32.totalorder %s25, 1
      %p406 = por %p404, %p405
      %p407 = scmp.ne.s32.totalorder %s399, %s402
      %p408 = scmp.eq.s32.totalorder %s25, 0
      %p409 = por %p407, %p408
      %p410 = scmp.ne.s32.totalorder %s399, %s402
      %p411 = scmp.eq.s32.totalorder %s30, 1
      %p412 = por %p410, %p411
      %p413 = scmp.ne.s32.totalorder %s402, %s403
      %p414 = scmp.eq.s32.totalorder %s30, 0
      %p415 = por %p413, %p414
      %p416 = scmp.ne.s32.totalorder %s402, %s403
      %p417 = scmp.eq.s32.totalorder %s31, 1
      %p418 = por %p416, %p417
      %p420 = scmp.ne.s32.totalorder %s403, %s419
      %p421 = scmp.eq.s32.totalorder %s31, 0
      %p422 = por %p420, %p421
      %s423 = ssub.s32 %s32, %s44
      %s424 = ssub.s32 %s33, %s40
      %s425 = sor.u32 %s423, %s424
      %p426 = scmp.eq.s32.totalorder %s425, 0
      %s428 = sadd.s32 %s427, 1
      %s429 = scalar_select %p426, %s427, %s428
      %p432 = pneg %p426
      %p433 = scmp.eq.s32.totalorder %s25, 1
      %p434 = por %p432, %p433
      %p435 = scmp.ne.s32.totalorder %s427, %s430
      %p436 = scmp.eq.s32.totalorder %s25, 0
      %p437 = por %p435, %p436
      %p438 = scmp.ne.s32.totalorder %s427, %s430
      %p439 = scmp.eq.s32.totalorder %s30, 1
      %p440 = por %p438, %p439
      %p441 = scmp.ne.s32.totalorder %s430, %s431
      %p442 = scmp.eq.s32.totalorder %s30, 0
      %p443 = por %p441, %p442
      %p444 = scmp.ne.s32.totalorder %s430, %s431
      %p445 = scmp.eq.s32.totalorder %s31, 1
      %p446 = por %p444, %p445
      %p448 = scmp.ne.s32.totalorder %s431, %s447
      %p449 = scmp.eq.s32.totalorder %s31, 0
      %p450 = por %p448, %p449
      %p451 = scmp.le.s32.totalorder 1, %s25
      %p452 = scmp.lt.s32.totalorder %s25, 3
      %p453 = pnand %p451, %p452
      %p454 = pneg %p453
      // Predicated region
      $region9: #{_lambda_.2} parent=5 // pred_check
        _
      $region10: #{_lambda_.2} parent=5 // pred_check_branch
        %456 = sbr.rel (%p453) target = $region12
      $region11: #{_lambda_.2} parent=5 // pred_region
        %s457 = ssub.s32 %s25, 1
        // Predicated region
        $region13: #{_lambda_.2} parent=11 // pred_check
          %p458 = pneg %p86
        $region14: #{_lambda_.2} parent=11 // pred_check_branch
          %460 = sbr.rel (%p458) target = $region16
        $region15: #{_lambda_.2} parent=11 // pred_region
          _
        $region16: #{_lambda_.2} parent=11 // pred_fallthru
          _
        // Predicated region
        $region17: #{_lambda_.2} parent=11 // pred_check
          %p461 = pneg %p107
        $region18: #{_lambda_.2} parent=11 // pred_check_branch
          %463 = sbr.rel (%p461) target = $region20
        $region19: #{_lambda_.2} parent=11 // pred_region
          _
        $region20: #{_lambda_.2} parent=11 // pred_fallthru
          _
        // Predicated region
        $region21: #{_lambda_.2} parent=11 // pred_check
          %p464 = pneg %p128
        $region22: #{_lambda_.2} parent=11 // pred_check_branch
          %466 = sbr.rel (%p464) target = $region24
        $region23: #{_lambda_.2} parent=11 // pred_region
          _
        $region24: #{_lambda_.2} parent=11 // pred_fallthru
          _
        // Predicated region
        $region25: #{_lambda_.2} parent=11 // pred_check
          %p467 = pneg %p149
        $region26: #{_lambda_.2} parent=11 // pred_check_branch
          %469 = sbr.rel (%p467) target = $region28
        $region27: #{_lambda_.2} parent=11 // pred_region
          _
        $region28: #{_lambda_.2} parent=11 // pred_fallthru
          _
        // Predicated region
        $region29: #{_lambda_.2} parent=11 // pred_check
          %p470 = pneg %p170
        $region30: #{_lambda_.2} parent=11 // pred_check_branch
          %472 = sbr.rel (%p470) target = $region32
        $region31: #{_lambda_.2} parent=11 // pred_region
          %s474 = ssub.s32 64, 64
          %475 = vsyncadd [#allocation3], %s474
          %s477 = sshll.u32 [#allocation2], 4
          %s478 = int_to_ptr.vmem [resolvable:$true] %s477
          %480 = dma.hbm_to_vmem [thread:$0]  %s5, 64, %s478, [#allocation3]
        $region32: #{_lambda_.2} parent=11 // pred_fallthru
          _
        // Predicated region
        $region33: #{_lambda_.2} parent=11 // pred_check
          %p481 = pneg %p191
        $region34: #{_lambda_.2} parent=11 // pred_check_branch
          %483 = sbr.rel (%p481) target = $region36
        $region35: #{_lambda_.2} parent=11 // pred_region
          _
        $region36: #{_lambda_.2} parent=11 // pred_fallthru
          _
        // Predicated region
        $region37: #{_lambda_.2} parent=11 // pred_check
          %p484 = pneg %p212
        $region38: #{_lambda_.2} parent=11 // pred_check_branch
          %486 = sbr.rel (%p484) target = $region40
        $region39: #{_lambda_.2} parent=11 // pred_region
          _
        $region40: #{_lambda_.2} parent=11 // pred_fallthru
          _
        // Predicated region
        $region41: #{_lambda_.2} parent=11 // pred_check
          %p487 = pneg %p233
        $region42: #{_lambda_.2} parent=11 // pred_check_branch
          %489 = sbr.rel (%p487) target = $region44
        $region43: #{_lambda_.2} parent=11 // pred_region
          _
        $region44: #{_lambda_.2} parent=11 // pred_fallthru
          _
        // Predicated region
        $region45: #{_lambda_.2} parent=11 // pred_check
          %p490 = pneg %p254
        $region46: #{_lambda_.2} parent=11 // pred_check_branch
          %492 = sbr.rel (%p490) target = $region48
        $region47: #{_lambda_.2} parent=11 // pred_region
          _
        $region48: #{_lambda_.2} parent=11 // pred_fallthru
          _
        // Predicated region
        $region49: #{_lambda_.2} parent=11 // pred_check
          %p493 = pneg %p275
        $region50: #{_lambda_.2} parent=11 // pred_check_branch
          %495 = sbr.rel (%p493) target = $region52
        $region51: #{_lambda_.2} parent=11 // pred_region
          _
        $region52: #{_lambda_.2} parent=11 // pred_fallthru
          _
        // Predicated region
        $region53: #{_lambda_.2} parent=11 // pred_check
          %p496 = pneg %p296
        $region54: #{_lambda_.2} parent=11 // pred_check_branch
          %498 = sbr.rel (%p496) target = $region56
        $region55: #{_lambda_.2} parent=11 // pred_region
          _
        $region56: #{_lambda_.2} parent=11 // pred_fallthru
          _
        // Predicated region
        $region57: #{_lambda_.2} parent=11 // pred_check
          %p499 = pneg %p317
        $region58: #{_lambda_.2} parent=11 // pred_check_branch
          %501 = sbr.rel (%p499) target = $region60
        $region59: #{_lambda_.2} parent=11 // pred_region
          _
        $region60: #{_lambda_.2} parent=11 // pred_fallthru
          _
        // Predicated region
        $region61: #{_lambda_.2} parent=11 // pred_check
          %p502 = pneg %p338
        $region62: #{_lambda_.2} parent=11 // pred_check_branch
          %504 = sbr.rel (%p502) target = $region64
        $region63: #{_lambda_.2} parent=11 // pred_region
          _
        $region64: #{_lambda_.2} parent=11 // pred_fallthru
          _
        // Predicated region
        $region65: #{_lambda_.2} parent=11 // pred_check
          %p505 = pneg %p359
        $region66: #{_lambda_.2} parent=11 // pred_check_branch
          %507 = sbr.rel (%p505) target = $region68
        $region67: #{_lambda_.2} parent=11 // pred_region
          _
        $region68: #{_lambda_.2} parent=11 // pred_fallthru
          _
      $region12: #{_lambda_.2} parent=5 // pred_fallthru
        _
      %p508 = scmp.lt.s32.totalorder %s25, 2
      // Predicated region
      $region69: #{_lambda_.2} parent=5 // pred_check
        %p509 = pneg %p508
      $region70: #{_lambda_.2} parent=5 // pred_check_branch
        %511 = sbr.rel (%p509) target = $region72
      $region71: #{_lambda_.2} parent=5 // pred_region
        // Predicated region
        $region73: #{_lambda_.2} parent=71 // pred_check
          %p512 = pneg %p59
        $region74: #{_lambda_.2} parent=71 // pred_check_branch
          %514 = sbr.rel (%p512) target = $region76
        $region75: #{_lambda_.2} parent=71 // pred_region
          %p515 = scmp.lt.s32.totalorder %s32, 1
          %s516 = scalar_select %p515, %s32, 1
          %p517 = scmp.lt.s32.totalorder %s33, 0
          %s518 = scalar_select %p517, %s33, 0
          %s519 = sadd.s32 %s518, %s516
          %s520 = smul.addr %s519, 8
          %s521 = scalar_lea.vmem %s0, %s520
        $region76: #{_lambda_.2} parent=71 // pred_fallthru
          _
      $region72: #{_lambda_.2} parent=5 // pred_fallthru
        _
      %p522 = scmp.le.s32.totalorder 1, %s25
      %p523 = scmp.lt.s32.totalorder %s25, 3
      %p524 = pnand %p522, %p523
      %p525 = pneg %p524
      // Predicated region
      $region77: #{_lambda_.2} parent=5 // pred_check
        _
      $region78: #{_lambda_.2} parent=5 // pred_check_branch
        %527 = sbr.rel (%p524) target = $region80
      $region79: #{_lambda_.2} parent=5 // pred_region
        %s528 = ssub.s32 %s25, 1
        // Predicated region
        $region81: #{_lambda_.2} parent=79 // pred_check
          %p529 = pneg %p170
        $region82: #{_lambda_.2} parent=79 // pred_check_branch
          %531 = sbr.rel (%p529) target = $region84
        $region83: #{_lambda_.2} parent=79 // pred_region
          %532 = dma.done [#allocation3], 64
        $region84: #{_lambda_.2} parent=79 // pred_fallthru
          _
        %p533 = scmp.lt.s32.totalorder %s34, 1
        %s534 = scalar_select %p533, %s34, 1
        %p535 = scmp.lt.s32.totalorder %s35, 0
        %s536 = scalar_select %p535, %s35, 0
        %s537 = sadd.s32 %s536, %s534
        %s538 = smul.addr %s537, 8
        %s539 = scalar_lea.vmem %s0, %s538
        %p540 = pneg %p65
        %p541 = pneg %p62
        %p542 = pneg %p86
        %p543 = pneg %p83
        %p544 = pneg %p107
        %p545 = pneg %p104
        %p546 = pneg %p128
        %p547 = pneg %p125
        %p548 = pneg %p149
        %p549 = pneg %p146
        %p550 = pneg %p170
        %p551 = pneg %p167
        %p552 = pneg %p191
        %p553 = pneg %p188
        %p554 = pneg %p212
        %p555 = pneg %p209
        %p556 = pneg %p233
        %p557 = pneg %p230
        %p558 = pneg %p254
        %p559 = pneg %p251
        %p560 = pneg %p275
        %p561 = pneg %p272
        %p562 = pneg %p296
        %p563 = pneg %p293
        %p564 = pneg %p317
        %p565 = pneg %p314
        %p566 = pneg %p338
        %p567 = pneg %p335
        %p568 = pneg %p359
        %p569 = pneg %p356
        %p570 = pneg %p387
        %p571 = pneg %p384
        %p572 = scmp.lt.s32.totalorder %s34, 1
        %s573 = scalar_select %p572, %s34, 1
        %p574 = scmp.lt.s32.totalorder %s35, 0
        %s575 = scalar_select %p574, %s35, 0
        %s576 = sadd.s32 %s575, %s573
        %s577 = smul.addr %s576, 8
        %s578 = scalar_lea.vmem %s15, %s577
        %p579 = pneg %p415
        %p580 = pneg %p412
        %p581 = scmp.lt.s32.totalorder %s34, 1
        %s582 = scalar_select %p581, %s34, 1
        %p583 = scmp.lt.s32.totalorder %s35, 0
        %s584 = scalar_select %p583, %s35, 0
        %s585 = sadd.s32 %s584, %s582
        %s586 = smul.addr %s585, 4
        %s587 = scalar_lea.vmem %s16, %s586
        %p588 = pneg %p443
        %p589 = pneg %p440
        %p590 = scmp.lt.s32.totalorder %s34, 1
        %s591 = scalar_select %p590, %s34, 1
        %p592 = scmp.lt.s32.totalorder %s35, 0
        %s593 = scalar_select %p592, %s35, 0
        %s594 = sadd.s32 %s593, %s591
        %s595 = smul.addr %s594, 4
        %s596 = scalar_lea.vmem %s17, %s595
        %p597 = scmp.lt.s32.totalorder %s34, 1
        %s598 = scalar_select %p597, %s34, 1
        %p599 = scmp.lt.s32.totalorder %s35, 0
        %s600 = scalar_select %p599, %s35, 0
        %s601 = sadd.s32 %s600, %s598
        %s602 = smul.addr %s601, 8
        %s603 = scalar_lea.vmem %s0, %s602
        %p604 = scmp.lt.s32.totalorder %s34, 1
        %s605 = scalar_select %p604, %s34, 1
        %p606 = scmp.lt.s32.totalorder %s35, 0
        %s607 = scalar_select %p606, %s35, 0
        %s608 = sadd.s32 %s607, %s605
        %s609 = smul.addr %s608, 8
        %s610 = scalar_lea.vmem %s15, %s609
        %p611 = scmp.lt.s32.totalorder %s34, 1
        %s612 = scalar_select %p611, %s34, 1
        %p613 = scmp.lt.s32.totalorder %s35, 0
        %s614 = scalar_select %p613, %s35, 0
        %s615 = sadd.s32 %s614, %s612
        %s616 = smul.addr %s615, 4
        %s617 = scalar_lea.vmem %s16, %s616
        %p618 = scmp.lt.s32.totalorder %s34, 1
        %s619 = scalar_select %p618, %s34, 1
        %p620 = scmp.lt.s32.totalorder %s35, 0
        %s621 = scalar_select %p620, %s35, 0
        %s622 = sadd.s32 %s621, %s619
        %s623 = smul.addr %s622, 4
        %s624 = scalar_lea.vmem %s17, %s623
        %v626 = vld [vmem:[%s603] sm:$0xff]
        %v627 = vpack.c.bf16 %v626, %v626
        %v628 = vld [vmem:[%s1] sm:$0xf]
        %v629 = vld [vmem:[%s1 + $0x4] sm:$0xf]
        %v630 = vld [vmem:[%s1 + $0x8] sm:$0xf]
        %v631 = vld [vmem:[%s1 + $0xc] sm:$0xf]
        %v632 = vld [vmem:[%s2] sm:$0x1]
        %v634 = vlaneseq
        %v635 = vshrl.u32 %v634, 7
        %v636 = vsub.s32 0, %v635
        %v637 = vrot.slane %v632, %v636
        %v643 = vunpack.c.l.b16 %v628
        %v644 = vunpack.c.l.b16 %v629
        %v645 = vunpack.c.l.b16 %v630
        %v646 = vunpack.c.l.b16 %v631
        %v647 = vpack.c.b16 %v644, %v643
        %v648 = vpack.c.b16 %v646, %v645
        %vm651 = vcmask 261120
        %v653 = vsel %vm651, %v627, 0
        %655 = vmatprep.subr.bf16.mxu0 0
        %656 = vmatpush1.bf16.msra.mxu0 %v647
        %657 = vmatprep.subr.bf16.mxu0 0
        %658 = vmatpush1.bf16.msra.mxu0 %v648
        %659 = vmatprep.subr.bf16.mxu0 0
        %660 = vmatpush1.bf16.msra.mxu0 0
        %661 = vmatprep.subr.bf16.mxu0 0
        %662 = vmatpush1.bf16.msra.mxu0 0
        %663 = vmatprep.subr.bf16.mxu0 0
        %664 = vmatpush1.bf16.msra.mxu0 0
        %665 = vmatprep.subr.bf16.mxu0 0
        %666 = vmatpush1.bf16.msra.mxu0 0
        %667 = vmatprep.subr.bf16.mxu0 0
        %668 = vmatpush1.bf16.msra.mxu0 0
        %669 = vmatprep.subr.bf16.mxu0 0
        %670 = vmatpush1.bf16.msra.mxu0 0
        %671 = vmatprep.subr.bf16.mxu0 0
        %672 = vmatpush1.bf16.msra.mxu0 0
        %673 = vmatprep.subr.bf16.mxu0 0
        %674 = vmatpush1.bf16.msra.mxu0 0
        %675 = vmatprep.subr.bf16.mxu0 0
        %676 = vmatpush1.bf16.msra.mxu0 0
        %677 = vmatprep.subr.bf16.mxu0 0
        %678 = vmatpush1.bf16.msra.mxu0 0
        %679 = vmatprep.subr.bf16.mxu0 0
        %680 = vmatpush1.bf16.msra.mxu0 0
        %681 = vmatprep.subr.bf16.mxu0 0
        %682 = vmatpush1.bf16.msra.mxu0 0
        %683 = vmatprep.subr.bf16.mxu0 0
        %684 = vmatpush1.bf16.msra.mxu0 0
        %685 = vmatprep.subr.bf16.mxu0 0
        %686 = vmatpush1.bf16.msra.mxu0 0
        %687 = vmatprep.mubr.bf16.mxu0 0
        %688 = vmatmul.mubr.bf16.gmra.mrb[0].mxu0 %v653
        %v689 = vpop.f32.mrb[0].mxu0
        %v690 = vadd.f32 %v637, %v689
        %v691 = vpop.f32.mrb[0].mxu0
        %v692 = vpop.f32.mrb[0].mxu0
        %v693 = vpop.f32.mrb[0].mxu0
        %694 = vdwg.mxu0
        %v695 = vmul.f32 %v690, 0.5
        %v696 = vmul.f32 %v690, %v690
        %v697 = vmul.f32 %v696, %v690
        %v698 = vmul.f32 %v697, 0.044715
        %v699 = vadd.f32 %v690, %v698
        %v700 = vmul.f32 %v699, 0.7978846
        %v701 = vtanh.pop %v700
        %v702 = vadd.f32 %v701, 1.0
        %v703 = vmul.f32 %v695, %v702
        %v704 = vld [vmem:[%s3] sm:$0x1]
        %v705 = vld [vmem:[%s4] sm:$0x1]
        %v706 = vsel %vm651, %v703, 0.0
        %707 = vadd.xlane.f32.xlu0 %v706
        %v708 = vpop.xlane.xlu0 %707
        %v709 = vrcp.pop 32.0
        %v710 = vmul.f32 %v708, %v709
        %v711 = vsub.f32 %v703, %v710
        %v712 = vmul.f32 %v711, %v711
        %v713 = vsel %vm651, %v712, 0.0
        %714 = vadd.xlane.f32.xlu0 %v713
        %v715 = vpop.xlane.xlu0 %714
        %v716 = vmul.f32 %v715, %v709
        %v717 = vadd.f32 %v716, 1e-05
        %v718 = vrsqrt.pop %v717
        %v719 = vmul.f32 %v711, %v718
        %v721 = vlaneseq
        %v722 = vshrl.u32 %v721, 7
        %v723 = vsub.s32 0, %v722
        %v724 = vrot.slane %v704, %v723
        %v726 = vmul.f32 %v719, %v724
        %v728 = vlaneseq
        %v729 = vshrl.u32 %v728, 7
        %v730 = vsub.s32 0, %v729
        %v731 = vrot.slane %v705, %v730
        %v733 = vadd.f32 %v726, %v731
        %v734 = vpack.c.bf16 %v733, %v733
        %v735 = vld [vmem:[#allocation2] sm:$0xf]
        %v736 = vld [vmem:[%s6] sm:$0xff]
        %738 = vset.pattern.permute.xlu0 0
        %739 = vperm.xlu0 %738, %v736
        %v740 = vpop.permute.xlu0 %739
        %v743 = vsel %vm651, %v735, 0
        %v746 = vsel %vm651, %v734, 0
        %748 = vmatprep.subr.bf16.mxu0 0
        %749 = vmatpush1.bf16.xpose.msra.mxu0 %v746
        %750 = vmatprep.subr.bf16.mxu0 0
        %751 = vmatpush1.bf16.xpose.msra.mxu0 0
        %752 = vmatprep.subr.bf16.mxu0 0
        %753 = vmatpush1.bf16.xpose.msra.mxu0 0
        %754 = vmatprep.subr.bf16.mxu0 0
        %755 = vmatpush1.bf16.xpose.msra.mxu0 0
        %756 = vmatprep.subr.bf16.mxu0 0
        %757 = vmatpush1.bf16.xpose.msra.mxu0 0
        %758 = vmatprep.subr.bf16.mxu0 0
        %759 = vmatpush1.bf16.xpose.msra.mxu0 0
        %760 = vmatprep.subr.bf16.mxu0 0
        %761 = vmatpush1.bf16.xpose.msra.mxu0 0
        %762 = vmatprep.subr.bf16.mxu0 0
        %763 = vmatpush1.bf16.xpose.msra.mxu0 0
        %764 = vmatprep.subr.bf16.mxu0 0
        %765 = vmatpush1.bf16.xpose.msra.mxu0 0
        %766 = vmatprep.subr.bf16.mxu0 0
        %767 = vmatpush1.bf16.xpose.msra.mxu0 0
        %768 = vmatprep.subr.bf16.mxu0 0
        %769 = vmatpush1.bf16.xpose.msra.mxu0 0
        %770 = vmatprep.subr.bf16.mxu0 0
        %771 = vmatpush1.bf16.xpose.msra.mxu0 0
        %772 = vmatprep.subr.bf16.mxu0 0
        %773 = vmatpush1.bf16.xpose.msra.mxu0 0
        %774 = vmatprep.subr.bf16.mxu0 0
        %775 = vmatpush1.bf16.xpose.msra.mxu0 0
        %776 = vmatprep.subr.bf16.mxu0 0
        %777 = vmatpush1.bf16.xpose.msra.mxu0 0
        %778 = vmatprep.subr.bf16.mxu0 0
        %779 = vmatpush1.bf16.xpose.msra.mxu0 0
        %780 = vmatprep.mubr.bf16.mxu0 0
        %781 = vmatmul.mubr.bf16.gmra.mrb[0].mxu0 %v743
        %v782 = vpop.f32.mrb[0].mxu0
        %v783 = vadd.f32 %v740, %v782
        %v784 = vpop.f32.mrb[0].mxu0
        %v785 = vpop.f32.mrb[0].mxu0
        %v786 = vpop.f32.mrb[0].mxu0
        %787 = vdwg.mxu0
        %vm788 = vcmask 64512
        %789 = vst.msk [vmem:[%s610] sm:$0xff] %vm788, %v783
        %v790 = vld [vmem:[%s7] sm:$0xf]
        %v791 = vld [vmem:[%s7 + $0x4] sm:$0xf]
        %v792 = vld [vmem:[%s7 + $0x8] sm:$0xf]
        %v793 = vld [vmem:[%s7 + $0xc] sm:$0xf]
        %v794 = vld [vmem:[%s8] sm:$0x1]
        %v796 = vlaneseq
        %v797 = vshrl.u32 %v796, 7
        %v798 = vsub.s32 0, %v797
        %v799 = vrot.slane %v794, %v798
        %v805 = vunpack.c.l.b16 %v790
        %v806 = vunpack.c.l.b16 %v791
        %v807 = vunpack.c.l.b16 %v792
        %v808 = vunpack.c.l.b16 %v793
        %v809 = vpack.c.b16 %v806, %v805
        %v810 = vpack.c.b16 %v808, %v807
        %813 = vmatprep.subr.bf16.mxu0 0
        %814 = vmatpush1.bf16.msra.mxu0 %v809
        %815 = vmatprep.subr.bf16.mxu0 0
        %816 = vmatpush1.bf16.msra.mxu0 %v810
        %817 = vmatprep.subr.bf16.mxu0 0
        %818 = vmatpush1.bf16.msra.mxu0 0
        %819 = vmatprep.subr.bf16.mxu0 0
        %820 = vmatpush1.bf16.msra.mxu0 0
        %821 = vmatprep.subr.bf16.mxu0 0
        %822 = vmatpush1.bf16.msra.mxu0 0
        %823 = vmatprep.subr.bf16.mxu0 0
        %824 = vmatpush1.bf16.msra.mxu0 0
        %825 = vmatprep.subr.bf16.mxu0 0
        %826 = vmatpush1.bf16.msra.mxu0 0
        %827 = vmatprep.subr.bf16.mxu0 0
        %828 = vmatpush1.bf16.msra.mxu0 0
        %829 = vmatprep.subr.bf16.mxu0 0
        %830 = vmatpush1.bf16.msra.mxu0 0
        %831 = vmatprep.subr.bf16.mxu0 0
        %832 = vmatpush1.bf16.msra.mxu0 0
        %833 = vmatprep.subr.bf16.mxu0 0
        %834 = vmatpush1.bf16.msra.mxu0 0
        %835 = vmatprep.subr.bf16.mxu0 0
        %836 = vmatpush1.bf16.msra.mxu0 0
        %837 = vmatprep.subr.bf16.mxu0 0
        %838 = vmatpush1.bf16.msra.mxu0 0
        %839 = vmatprep.subr.bf16.mxu0 0
        %840 = vmatpush1.bf16.msra.mxu0 0
        %841 = vmatprep.subr.bf16.mxu0 0
        %842 = vmatpush1.bf16.msra.mxu0 0
        %843 = vmatprep.subr.bf16.mxu0 0
        %844 = vmatpush1.bf16.msra.mxu0 0
        %845 = vmatprep.mubr.bf16.mxu0 0
        %846 = vmatmul.mubr.bf16.gmra.mrb[0].mxu0 %v653
        %v847 = vpop.f32.mrb[0].mxu0
        %v848 = vadd.f32 %v799, %v847
        %v849 = vpop.f32.mrb[0].mxu0
        %v850 = vpop.f32.mrb[0].mxu0
        %v851 = vpop.f32.mrb[0].mxu0
        %852 = vdwg.mxu0
        %v853 = vmul.f32 %v848, 0.5
        %v854 = vmul.f32 %v848, %v848
        %v855 = vmul.f32 %v854, %v848
        %v856 = vmul.f32 %v855, 0.044715
        %v857 = vadd.f32 %v848, %v856
        %v858 = vmul.f32 %v857, 0.7978846
        %v859 = vtanh.pop %v858
        %v860 = vadd.f32 %v859, 1.0
        %v861 = vmul.f32 %v853, %v860
        %v862 = vld [vmem:[%s9] sm:$0x1]
        %v863 = vld [vmem:[%s10] sm:$0x1]
        %v864 = vsel %vm651, %v861, 0.0
        %865 = vadd.xlane.f32.xlu0 %v864
        %v866 = vpop.xlane.xlu0 %865
        %v867 = vmul.f32 %v866, %v709
        %v868 = vsub.f32 %v861, %v867
        %v869 = vmul.f32 %v868, %v868
        %v870 = vsel %vm651, %v869, 0.0
        %871 = vadd.xlane.f32.xlu0 %v870
        %v872 = vpop.xlane.xlu0 %871
        %v873 = vmul.f32 %v872, %v709
        %v874 = vadd.f32 %v873, 1e-05
        %v875 = vrsqrt.pop %v874
        %v876 = vmul.f32 %v868, %v875
        %v878 = vlaneseq
        %v879 = vshrl.u32 %v878, 7
        %v880 = vsub.s32 0, %v879
        %v881 = vrot.slane %v862, %v880
        %v883 = vmul.f32 %v876, %v881
        %v885 = vlaneseq
        %v886 = vshrl.u32 %v885, 7
        %v887 = vsub.s32 0, %v886
        %v888 = vrot.slane %v863, %v887
        %v890 = vadd.f32 %v883, %v888
        %v891 = vpack.c.bf16 %v890, %v890
        %v892 = vld [vmem:[%s11] sm:$0xf]
        %v893 = vld [vmem:[%s11 + $0x4] sm:$0xf]
        %v894 = vld [vmem:[%s11 + $0x8] sm:$0xf]
        %v895 = vld [vmem:[%s11 + $0xc] sm:$0xf]
        %v896 = vld [vmem:[%s12] sm:$0x1]
        %v898 = vlaneseq
        %v899 = vshrl.u32 %v898, 7
        %v900 = vsub.s32 0, %v899
        %v901 = vrot.slane %v896, %v900
        %v907 = vunpack.c.l.b16 %v892
        %v908 = vunpack.c.l.b16 %v893
        %v909 = vunpack.c.l.b16 %v894
        %v910 = vunpack.c.l.b16 %v895
        %v911 = vpack.c.b16 %v908, %v907
        %v912 = vpack.c.b16 %v910, %v909
        %v916 = vsel %vm651, %v891, 0
        %918 = vmatprep.subr.bf16.mxu0 0
        %919 = vmatpush1.bf16.msra.mxu0 %v911
        %920 = vmatprep.subr.bf16.mxu0 0
        %921 = vmatpush1.bf16.msra.mxu0 %v912
        %922 = vmatprep.subr.bf16.mxu0 0
        %923 = vmatpush1.bf16.msra.mxu0 0
        %924 = vmatprep.subr.bf16.mxu0 0
        %925 = vmatpush1.bf16.msra.mxu0 0
        %926 = vmatprep.subr.bf16.mxu0 0
        %927 = vmatpush1.bf16.msra.mxu0 0
        %928 = vmatprep.subr.bf16.mxu0 0
        %929 = vmatpush1.bf16.msra.mxu0 0
        %930 = vmatprep.subr.bf16.mxu0 0
        %931 = vmatpush1.bf16.msra.mxu0 0
        %932 = vmatprep.subr.bf16.mxu0 0
        %933 = vmatpush1.bf16.msra.mxu0 0
        %934 = vmatprep.subr.bf16.mxu0 0
        %935 = vmatpush1.bf16.msra.mxu0 0
        %936 = vmatprep.subr.bf16.mxu0 0
        %937 = vmatpush1.bf16.msra.mxu0 0
        %938 = vmatprep.subr.bf16.mxu0 0
        %939 = vmatpush1.bf16.msra.mxu0 0
        %940 = vmatprep.subr.bf16.mxu0 0
        %941 = vmatpush1.bf16.msra.mxu0 0
        %942 = vmatprep.subr.bf16.mxu0 0
        %943 = vmatpush1.bf16.msra.mxu0 0
        %944 = vmatprep.subr.bf16.mxu0 0
        %945 = vmatpush1.bf16.msra.mxu0 0
        %946 = vmatprep.subr.bf16.mxu0 0
        %947 = vmatpush1.bf16.msra.mxu0 0
        %948 = vmatprep.subr.bf16.mxu0 0
        %949 = vmatpush1.bf16.msra.mxu0 0
        %950 = vmatprep.mubr.bf16.mxu0 0
        %951 = vmatmul.mubr.bf16.gmra.mrb[0].mxu0 %v916
        %v952 = vpop.f32.mrb[0].mxu0
        %v953 = vadd.f32 %v901, %v952
        %v954 = vpop.f32.mrb[0].mxu0
        %v955 = vpop.f32.mrb[0].mxu0
        %v956 = vpop.f32.mrb[0].mxu0
        %957 = vdwg.mxu0
        %v958 = vpack.c.bf16 %v953, %v953
        %vm959 = vcmask 257024
        %960 = vst.msk [vmem:[%s617] sm:$0xf] %vm959, %v958
        %v961 = vld [vmem:[%s13] sm:$0xf]
        %v962 = vld [vmem:[%s13 + $0x4] sm:$0xf]
        %v963 = vld [vmem:[%s13 + $0x8] sm:$0xf]
        %v964 = vld [vmem:[%s13 + $0xc] sm:$0xf]
        %v965 = vld [vmem:[%s14] sm:$0x1]
        %v967 = vlaneseq
        %v968 = vshrl.u32 %v967, 7
        %v969 = vsub.s32 0, %v968
        %v970 = vrot.slane %v965, %v969
        %v976 = vunpack.c.l.b16 %v961
        %v977 = vunpack.c.l.b16 %v962
        %v978 = vunpack.c.l.b16 %v963
        %v979 = vunpack.c.l.b16 %v964
        %v980 = vpack.c.b16 %v977, %v976
        %v981 = vpack.c.b16 %v979, %v978
        %984 = vmatprep.subr.bf16.mxu0 0
        %985 = vmatpush1.bf16.msra.mxu0 %v980
        %986 = vmatprep.subr.bf16.mxu0 0
        %987 = vmatpush1.bf16.msra.mxu0 %v981
        %988 = vmatprep.subr.bf16.mxu0 0
        %989 = vmatpush1.bf16.msra.mxu0 0
        %990 = vmatprep.subr.bf16.mxu0 0
        %991 = vmatpush1.bf16.msra.mxu0 0
        %992 = vmatprep.subr.bf16.mxu0 0
        %993 = vmatpush1.bf16.msra.mxu0 0
        %994 = vmatprep.subr.bf16.mxu0 0
        %995 = vmatpush1.bf16.msra.mxu0 0
        %996 = vmatprep.subr.bf16.mxu0 0
        %997 = vmatpush1.bf16.msra.mxu0 0
        %998 = vmatprep.subr.bf16.mxu0 0
        %999 = vmatpush1.bf16.msra.mxu0 0
        %1000 = vmatprep.subr.bf16.mxu0 0
        %1001 = vmatpush1.bf16.msra.mxu0 0
        %1002 = vmatprep.subr.bf16.mxu0 0
        %1003 = vmatpush1.bf16.msra.mxu0 0
        %1004 = vmatprep.subr.bf16.mxu0 0
        %1005 = vmatpush1.bf16.msra.mxu0 0
        %1006 = vmatprep.subr.bf16.mxu0 0
        %1007 = vmatpush1.bf16.msra.mxu0 0
        %1008 = vmatprep.subr.bf16.mxu0 0
        %1009 = vmatpush1.bf16.msra.mxu0 0
        %1010 = vmatprep.subr.bf16.mxu0 0
        %1011 = vmatpush1.bf16.msra.mxu0 0
        %1012 = vmatprep.subr.bf16.mxu0 0
        %1013 = vmatpush1.bf16.msra.mxu0 0
        %1014 = vmatprep.subr.bf16.mxu0 0
        %1015 = vmatpush1.bf16.msra.mxu0 0
        %1016 = vmatprep.mubr.bf16.mxu0 0
        %1017 = vmatmul.mubr.bf16.gmra.mrb[0].mxu0 %v916
        %v1018 = vpop.f32.mrb[0].mxu0
        %v1019 = vadd.f32 %v970, %v1018
        %v1020 = vpop.f32.mrb[0].mxu0
        %v1021 = vpop.f32.mrb[0].mxu0
        %v1022 = vpop.f32.mrb[0].mxu0
        %1023 = vdwg.mxu0
        %v1024 = vpack.c.bf16 %v1019, %v1019
        %1025 = vst.msk [vmem:[%s624] sm:$0xf] %vm959, %v1024
        %p1026 = scmp.lt.s32.totalorder %s34, 1
        %s1027 = scalar_select %p1026, %s34, 1
        %p1028 = scmp.lt.s32.totalorder %s35, 0
        %s1029 = scalar_select %p1028, %s35, 0
        %s1030 = sadd.s32 %s1029, %s1027
        %s1031 = smul.addr %s1030, 8
        %s1032 = scalar_lea.vmem %s15, %s1031
        %p1033 = scmp.lt.s32.totalorder %s34, 1
        %s1034 = scalar_select %p1033, %s34, 1
        %p1035 = scmp.lt.s32.totalorder %s35, 0
        %s1036 = scalar_select %p1035, %s35, 0
        %s1037 = sadd.s32 %s1036, %s1034
        %s1038 = smul.addr %s1037, 4
        %s1039 = scalar_lea.vmem %s16, %s1038
        %p1040 = scmp.lt.s32.totalorder %s34, 1
        %s1041 = scalar_select %p1040, %s34, 1
        %p1042 = scmp.lt.s32.totalorder %s35, 0
        %s1043 = scalar_select %p1042, %s35, 0
        %s1044 = sadd.s32 %s1043, %s1041
        %s1045 = smul.addr %s1044, 4
        %s1046 = scalar_lea.vmem %s17, %s1045
        // Predicated region
        $region85: #{_lambda_.2} parent=79 // pred_check
          %p1047 = pneg %p384
        $region86: #{_lambda_.2} parent=79 // pred_check_branch
          %1049 = sbr.rel (%p1047) target = $region88
        $region87: #{_lambda_.2} parent=79 // pred_region
          _
        $region88: #{_lambda_.2} parent=79 // pred_fallthru
          _
        // Predicated region
        $region89: #{_lambda_.2} parent=79 // pred_check
          %p1050 = pneg %p412
        $region90: #{_lambda_.2} parent=79 // pred_check_branch
          %1052 = sbr.rel (%p1050) target = $region92
        $region91: #{_lambda_.2} parent=79 // pred_region
          _
        $region92: #{_lambda_.2} parent=79 // pred_fallthru
          _
        // Predicated region
        $region93: #{_lambda_.2} parent=79 // pred_check
          %p1053 = pneg %p440
        $region94: #{_lambda_.2} parent=79 // pred_check_branch
          %1055 = sbr.rel (%p1053) target = $region96
        $region95: #{_lambda_.2} parent=79 // pred_region
          _
        $region96: #{_lambda_.2} parent=79 // pred_fallthru
          _
      $region80: #{_lambda_.2} parent=5 // pred_fallthru
        _
      %p1056 = scmp.le.s32.totalorder 2, %s25
      // Predicated region
      $region97: #{_lambda_.2} parent=5 // pred_check
        %p1057 = pneg %p1056
      $region98: #{_lambda_.2} parent=5 // pred_check_branch
        %1059 = sbr.rel (%p1057) target = $region100
      $region99: #{_lambda_.2} parent=5 // pred_region
        %s1060 = ssub.s32 %s25, 2
        // Predicated region
        $region101: #{_lambda_.2} parent=99 // pred_check
          %p1061 = pneg %p390
        $region102: #{_lambda_.2} parent=99 // pred_check_branch
          %1063 = sbr.rel (%p1061) target = $region104
        $region103: #{_lambda_.2} parent=99 // pred_region
          %p1064 = scmp.lt.s32.totalorder %s36, 1
          %s1065 = scalar_select %p1064, %s36, 1
          %p1066 = scmp.lt.s32.totalorder %s37, 0
          %s1067 = scalar_select %p1066, %s37, 0
          %s1068 = sadd.s32 %s1067, %s1065
          %s1069 = smul.addr %s1068, 8
          %s1070 = scalar_lea.vmem %s15, %s1069
        $region104: #{_lambda_.2} parent=99 // pred_fallthru
          _
        // Predicated region
        $region105: #{_lambda_.2} parent=99 // pred_check
          %p1071 = pneg %p418
        $region106: #{_lambda_.2} parent=99 // pred_check_branch
          %1073 = sbr.rel (%p1071) target = $region108
        $region107: #{_lambda_.2} parent=99 // pred_region
          %p1074 = scmp.lt.s32.totalorder %s36, 1
          %s1075 = scalar_select %p1074, %s36, 1
          %p1076 = scmp.lt.s32.totalorder %s37, 0
          %s1077 = scalar_select %p1076, %s37, 0
          %s1078 = sadd.s32 %s1077, %s1075
          %s1079 = smul.addr %s1078, 4
          %s1080 = scalar_lea.vmem %s16, %s1079
        $region108: #{_lambda_.2} parent=99 // pred_fallthru
          _
        // Predicated region
        $region109: #{_lambda_.2} parent=99 // pred_check
          %p1081 = pneg %p446
        $region110: #{_lambda_.2} parent=99 // pred_check_branch
          %1083 = sbr.rel (%p1081) target = $region112
        $region111: #{_lambda_.2} parent=99 // pred_region
          %p1084 = scmp.lt.s32.totalorder %s36, 1
          %s1085 = scalar_select %p1084, %s36, 1
          %p1086 = scmp.lt.s32.totalorder %s37, 0
          %s1087 = scalar_select %p1086, %s37, 0
          %s1088 = sadd.s32 %s1087, %s1085
          %s1089 = smul.addr %s1088, 4
          %s1090 = scalar_lea.vmem %s17, %s1089
        $region112: #{_lambda_.2} parent=99 // pred_fallthru
          _
      $region100: #{_lambda_.2} parent=5 // pred_fallthru
        _
    $region6: #{_lambda_.2} parent=1 // loop_footer
      %s29 = sadd.s32 1, %s25
    $region7: #{_lambda_.2} parent=1 // loop_footer_branch
      %24 = sbr.rel target = $region3
    $region8: #{_lambda_.2} parent=1 // loop_exit
      _
    %1091 = vsyncpa [#allocation3], 1
    %s1092 = scalar_lea.sflag [#allocation3], 1
    %1093 = vsyncpa %s1092, 1

// kernel: _lambda_.3
$region0: #{_lambda_.3}
  #allocation0 [shape = 'u32[]', space=smem, size = 0x4, offset = 0x4, fixed_abs, tag = 'smem constant byte address 0x4 - core index']
  #allocation1 [shape = 'u32[144,128]{1,0:T(1,128)}', space=vmem, size = 0x12000, scoped, tag = 'internal scratch']
  %s0 = inlined_call_operand.vmem [shape: bf16[2,8,32], index: 0, kind: input, shape index: {}]
  %s1 = inlined_call_operand.vmem [shape: bf16[2,8,32], index: 1, kind: input, shape index: {}]
  %s2 = inlined_call_operand.vmem [shape: f32[2,8,8,16], index: 2, kind: input, shape index: {}]
  %s3 = inlined_call_operand.vmem [shape: bf16[32,16], index: 3, kind: input, shape index: {}]
  %s4 = inlined_call_operand.vmem [shape: bf16[32,16], index: 4, kind: input, shape index: {}]
  %s5 = inlined_call_operand.vmem [shape: f32[1,16], index: 5, kind: input, shape index: {}]
  %s6 = inlined_call_operand.vmem [shape: bf16[4,16], index: 6, kind: input, shape index: {}]
  %s7 = inlined_call_operand.vmem [shape: bf16[4,16], index: 7, kind: input, shape index: {}]
  %s8 = inlined_call_operand.vmem [shape: f32[4,1], index: 8, kind: input, shape index: {}]
  %s9 = inlined_call_operand.vmem [shape: f32[2,4,8,8], index: 9, kind: output, shape index: {}]
  %s10 = sld [smem:[#allocation0]]
  $region69: #{_lambda_.3} parent=0
    _
  %s12 = ssub.s32 1, %s10
  %s13 = scalar_select 0, %s12, %s10
  loop: start=0, step=1, limit=4
  $region2: #{_lambda_.3} parent=0 // loop_pre_header
    _
  $region3: #{_lambda_.3} parent=0 // loop_header
    %s15 = sphi 0, %s19
    %p16 = scmp.ge.s32.totalorder %s15, 4
    %s22 = sphi 0, %s41
    %s23 = sphi 0, %s37
    %s24 = sphi 0, %s33
    %s25 = sphi 0, %s22
    %s26 = sphi 0, %s23
    %s27 = sphi 0, %s24
    %s28 = sphi 0, %s25
    %s29 = sphi 0, %s26
    %s30 = sphi 0, %s27
    %s46 = sphi 0, %s48
    %s49 = sphi 0, %s46
    %s50 = sphi 0, %s49
    %s66 = sphi 0, %s50
    %s74 = sphi 0, %s76
    %s77 = sphi 0, %s74
    %s78 = sphi 0, %s77
    %s94 = sphi 0, %s78
    %s104 = sphi 0, %s106
    %s107 = sphi 0, %s104
    %s108 = sphi 0, %s107
    %s124 = sphi 0, %s108
    %s128 = sphi 0, %s128
    %s130 = sphi 0, %s128
    %s131 = sphi 0, %s130
    %s145 = sphi 0, %s131
    %s149 = sphi 0, %s149
    %s151 = sphi 0, %s149
    %s152 = sphi 0, %s151
    %s166 = sphi 0, %s152
    %s170 = sphi 0, %s170
    %s172 = sphi 0, %s170
    %s173 = sphi 0, %s172
    %s187 = sphi 0, %s173
    %s191 = sphi 0, %s191
    %s193 = sphi 0, %s191
    %s194 = sphi 0, %s193
    %s208 = sphi 0, %s194
    %s212 = sphi 0, %s212
    %s214 = sphi 0, %s212
    %s215 = sphi 0, %s214
    %s229 = sphi 0, %s215
    %s233 = sphi 0, %s233
    %s235 = sphi 0, %s233
    %s236 = sphi 0, %s235
    %s250 = sphi 0, %s236
    %s260 = sphi 0, %s262
    %s263 = sphi 0, %s260
    %s264 = sphi 0, %s263
    %s280 = sphi 0, %s264
  $region4: #{_lambda_.3} parent=0 // loop_header_branch
    %18 = sbr.rel (%p16) target = $region8
  $region5: #{_lambda_.3} parent=0 // loop_body
    %s20 = ssub.s32 %s15, 1
    %s21 = ssub.s32 %s15, 2
    %s31 = sadd.s32 1, %s24
    %p32 = scmp.ge.s32.totalorder %s31, 1
    %s33 = scalar_select %p32, 0, %s31
    %s34 = sadd.s32 1, %s23
    %s35 = scalar_select %p32, %s34, %s23
    %p36 = scmp.ge.s32.totalorder %s35, 1
    %s37 = scalar_select %p36, 0, %s35
    %s38 = sadd.s32 1, %s22
    %s39 = scalar_select %p36, %s38, %s22
    %p40 = scmp.ge.s32.totalorder %s39, 2
    %s41 = scalar_select %p40, 0, %s39
    %s42 = ssub.s32 %s22, %s41
    %s43 = ssub.s32 %s24, %s33
    %s44 = sor.u32 %s42, %s43
    %p45 = scmp.eq.s32.totalorder %s44, 0
    %s47 = sadd.s32 %s46, 1
    %s48 = scalar_select %p45, %s46, %s47
    %p51 = pneg %p45
    %p52 = scmp.eq.s32.totalorder %s15, 1
    %p53 = por %p51, %p52
    %p54 = scmp.ne.s32.totalorder %s46, %s49
    %p55 = scmp.eq.s32.totalorder %s15, 0
    %p56 = por %p54, %p55
    %p57 = scmp.ne.s32.totalorder %s46, %s49
    %p58 = scmp.eq.s32.totalorder %s20, 1
    %p59 = por %p57, %p58
    %p60 = scmp.ne.s32.totalorder %s49, %s50
    %p61 = scmp.eq.s32.totalorder %s20, 0
    %p62 = por %p60, %p61
    %p63 = scmp.ne.s32.totalorder %s49, %s50
    %p64 = scmp.eq.s32.totalorder %s21, 1
    %p65 = por %p63, %p64
    %p67 = scmp.ne.s32.totalorder %s50, %s66
    %p68 = scmp.eq.s32.totalorder %s21, 0
    %p69 = por %p67, %p68
    %s70 = ssub.s32 %s22, %s41
    %s71 = ssub.s32 %s23, %s37
    %s72 = sor.u32 %s70, %s71
    %p73 = scmp.eq.s32.totalorder %s72, 0
    %s75 = sadd.s32 %s74, 1
    %s76 = scalar_select %p73, %s74, %s75
    %p79 = pneg %p73
    %p80 = scmp.eq.s32.totalorder %s15, 1
    %p81 = por %p79, %p80
    %p82 = scmp.ne.s32.totalorder %s74, %s77
    %p83 = scmp.eq.s32.totalorder %s15, 0
    %p84 = por %p82, %p83
    %p85 = scmp.ne.s32.totalorder %s74, %s77
    %p86 = scmp.eq.s32.totalorder %s20, 1
    %p87 = por %p85, %p86
    %p88 = scmp.ne.s32.totalorder %s77, %s78
    %p89 = scmp.eq.s32.totalorder %s20, 0
    %p90 = por %p88, %p89
    %p91 = scmp.ne.s32.totalorder %s77, %s78
    %p92 = scmp.eq.s32.totalorder %s21, 1
    %p93 = por %p91, %p92
    %p95 = scmp.ne.s32.totalorder %s78, %s94
    %p96 = scmp.eq.s32.totalorder %s21, 0
    %p97 = por %p95, %p96
    %s98 = ssub.s32 %s22, %s41
    %s99 = ssub.s32 %s23, %s37
    %s100 = sor.u32 %s98, %s99
    %s101 = ssub.s32 %s24, %s33
    %s102 = sor.u32 %s100, %s101
    %p103 = scmp.eq.s32.totalorder %s102, 0
    %s105 = sadd.s32 %s104, 1
    %s106 = scalar_select %p103, %s104, %s105
    %p109 = pneg %p103
    %p110 = scmp.eq.s32.totalorder %s15, 1
    %p111 = por %p109, %p110
    %p112 = scmp.ne.s32.totalorder %s104, %s107
    %p113 = scmp.eq.s32.totalorder %s15, 0
    %p114 = por %p112, %p113
    %p115 = scmp.ne.s32.totalorder %s104, %s107
    %p116 = scmp.eq.s32.totalorder %s20, 1
    %p117 = por %p115, %p116
    %p118 = scmp.ne.s32.totalorder %s107, %s108
    %p119 = scmp.eq.s32.totalorder %s20, 0
    %p120 = por %p118, %p119
    %p121 = scmp.ne.s32.totalorder %s107, %s108
    %p122 = scmp.eq.s32.totalorder %s21, 1
    %p123 = por %p121, %p122
    %p125 = scmp.ne.s32.totalorder %s108, %s124
    %p126 = scmp.eq.s32.totalorder %s21, 0
    %p127 = por %p125, %p126
    %s129 = sadd.s32 %s128, 1
    %p132 = scmp.eq.s32.totalorder %s15, 1
    %p133 = scmp.ne.s32.totalorder %s128, %s130
    %p134 = scmp.eq.s32.totalorder %s15, 0
    %p135 = por %p133, %p134
    %p136 = scmp.ne.s32.totalorder %s128, %s130
    %p137 = scmp.eq.s32.totalorder %s20, 1
    %p138 = por %p136, %p137
    %p139 = scmp.ne.s32.totalorder %s130, %s131
    %p140 = scmp.eq.s32.totalorder %s20, 0
    %p141 = por %p139, %p140
    %p142 = scmp.ne.s32.totalorder %s130, %s131
    %p143 = scmp.eq.s32.totalorder %s21, 1
    %p144 = por %p142, %p143
    %p146 = scmp.ne.s32.totalorder %s131, %s145
    %p147 = scmp.eq.s32.totalorder %s21, 0
    %p148 = por %p146, %p147
    %s150 = sadd.s32 %s149, 1
    %p153 = scmp.eq.s32.totalorder %s15, 1
    %p154 = scmp.ne.s32.totalorder %s149, %s151
    %p155 = scmp.eq.s32.totalorder %s15, 0
    %p156 = por %p154, %p155
    %p157 = scmp.ne.s32.totalorder %s149, %s151
    %p158 = scmp.eq.s32.totalorder %s20, 1
    %p159 = por %p157, %p158
    %p160 = scmp.ne.s32.totalorder %s151, %s152
    %p161 = scmp.eq.s32.totalorder %s20, 0
    %p162 = por %p160, %p161
    %p163 = scmp.ne.s32.totalorder %s151, %s152
    %p164 = scmp.eq.s32.totalorder %s21, 1
    %p165 = por %p163, %p164
    %p167 = scmp.ne.s32.totalorder %s152, %s166
    %p168 = scmp.eq.s32.totalorder %s21, 0
    %p169 = por %p167, %p168
    %s171 = sadd.s32 %s170, 1
    %p174 = scmp.eq.s32.totalorder %s15, 1
    %p175 = scmp.ne.s32.totalorder %s170, %s172
    %p176 = scmp.eq.s32.totalorder %s15, 0
    %p177 = por %p175, %p176
    %p178 = scmp.ne.s32.totalorder %s170, %s172
    %p179 = scmp.eq.s32.totalorder %s20, 1
    %p180 = por %p178, %p179
    %p181 = scmp.ne.s32.totalorder %s172, %s173
    %p182 = scmp.eq.s32.totalorder %s20, 0
    %p183 = por %p181, %p182
    %p184 = scmp.ne.s32.totalorder %s172, %s173
    %p185 = scmp.eq.s32.totalorder %s21, 1
    %p186 = por %p184, %p185
    %p188 = scmp.ne.s32.totalorder %s173, %s187
    %p189 = scmp.eq.s32.totalorder %s21, 0
    %p190 = por %p188, %p189
    %s192 = sadd.s32 %s191, 1
    %p195 = scmp.eq.s32.totalorder %s15, 1
    %p196 = scmp.ne.s32.totalorder %s191, %s193
    %p197 = scmp.eq.s32.totalorder %s15, 0
    %p198 = por %p196, %p197
    %p199 = scmp.ne.s32.totalorder %s191, %s193
    %p200 = scmp.eq.s32.totalorder %s20, 1
    %p201 = por %p199, %p200
    %p202 = scmp.ne.s32.totalorder %s193, %s194
    %p203 = scmp.eq.s32.totalorder %s20, 0
    %p204 = por %p202, %p203
    %p205 = scmp.ne.s32.totalorder %s193, %s194
    %p206 = scmp.eq.s32.totalorder %s21, 1
    %p207 = por %p205, %p206
    %p209 = scmp.ne.s32.totalorder %s194, %s208
    %p210 = scmp.eq.s32.totalorder %s21, 0
    %p211 = por %p209, %p210
    %s213 = sadd.s32 %s212, 1
    %p216 = scmp.eq.s32.totalorder %s15, 1
    %p217 = scmp.ne.s32.totalorder %s212, %s214
    %p218 = scmp.eq.s32.totalorder %s15, 0
    %p219 = por %p217, %p218
    %p220 = scmp.ne.s32.totalorder %s212, %s214
    %p221 = scmp.eq.s32.totalorder %s20, 1
    %p222 = por %p220, %p221
    %p223 = scmp.ne.s32.totalorder %s214, %s215
    %p224 = scmp.eq.s32.totalorder %s20, 0
    %p225 = por %p223, %p224
    %p226 = scmp.ne.s32.totalorder %s214, %s215
    %p227 = scmp.eq.s32.totalorder %s21, 1
    %p228 = por %p226, %p227
    %p230 = scmp.ne.s32.totalorder %s215, %s229
    %p231 = scmp.eq.s32.totalorder %s21, 0
    %p232 = por %p230, %p231
    %s234 = sadd.s32 %s233, 1
    %p237 = scmp.eq.s32.totalorder %s15, 1
    %p238 = scmp.ne.s32.totalorder %s233, %s235
    %p239 = scmp.eq.s32.totalorder %s15, 0
    %p240 = por %p238, %p239
    %p241 = scmp.ne.s32.totalorder %s233, %s235
    %p242 = scmp.eq.s32.totalorder %s20, 1
    %p243 = por %p241, %p242
    %p244 = scmp.ne.s32.totalorder %s235, %s236
    %p245 = scmp.eq.s32.totalorder %s20, 0
    %p246 = por %p244, %p245
    %p247 = scmp.ne.s32.totalorder %s235, %s236
    %p248 = scmp.eq.s32.totalorder %s21, 1
    %p249 = por %p247, %p248
    %p251 = scmp.ne.s32.totalorder %s236, %s250
    %p252 = scmp.eq.s32.totalorder %s21, 0
    %p253 = por %p251, %p252
    %s254 = ssub.s32 %s22, %s41
    %s255 = ssub.s32 %s23, %s37
    %s256 = sor.u32 %s254, %s255
    %s257 = ssub.s32 %s24, %s33
    %s258 = sor.u32 %s256, %s257
    %p259 = scmp.eq.s32.totalorder %s258, 0
    %s261 = sadd.s32 %s260, 1
    %s262 = scalar_select %p259, %s260, %s261
    %p265 = pneg %p259
    %p266 = scmp.eq.s32.totalorder %s15, 1
    %p267 = por %p265, %p266
    %p268 = scmp.ne.s32.totalorder %s260, %s263
    %p269 = scmp.eq.s32.totalorder %s15, 0
    %p270 = por %p268, %p269
    %p271 = scmp.ne.s32.totalorder %s260, %s263
    %p272 = scmp.eq.s32.totalorder %s20, 1
    %p273 = por %p271, %p272
    %p274 = scmp.ne.s32.totalorder %s263, %s264
    %p275 = scmp.eq.s32.totalorder %s20, 0
    %p276 = por %p274, %p275
    %p277 = scmp.ne.s32.totalorder %s263, %s264
    %p278 = scmp.eq.s32.totalorder %s21, 1
    %p279 = por %p277, %p278
    %p281 = scmp.ne.s32.totalorder %s264, %s280
    %p282 = scmp.eq.s32.totalorder %s21, 0
    %p283 = por %p281, %p282
    %p284 = scmp.le.s32.totalorder 1, %s15
    %p285 = scmp.lt.s32.totalorder %s15, 3
    %p286 = pnand %p284, %p285
    %p287 = pneg %p286
    // Predicated region
    $region9: #{_lambda_.3} parent=5 // pred_check
      _
    $region10: #{_lambda_.3} parent=5 // pred_check_branch
      %289 = sbr.rel (%p286) target = $region12
    $region11: #{_lambda_.3} parent=5 // pred_region
      %s290 = ssub.s32 %s15, 1
      // Predicated region
      $region13: #{_lambda_.3} parent=11 // pred_check
        %p291 = pneg %p141
      $region14: #{_lambda_.3} parent=11 // pred_check_branch
        %293 = sbr.rel (%p291) target = $region16
      $region15: #{_lambda_.3} parent=11 // pred_region
        _
      $region16: #{_lambda_.3} parent=11 // pred_fallthru
        _
      // Predicated region
      $region17: #{_lambda_.3} parent=11 // pred_check
        %p294 = pneg %p162
      $region18: #{_lambda_.3} parent=11 // pred_check_branch
        %296 = sbr.rel (%p294) target = $region20
      $region19: #{_lambda_.3} parent=11 // pred_region
        _
      $region20: #{_lambda_.3} parent=11 // pred_fallthru
        _
      // Predicated region
      $region21: #{_lambda_.3} parent=11 // pred_check
        %p297 = pneg %p183
      $region22: #{_lambda_.3} parent=11 // pred_check_branch
        %299 = sbr.rel (%p297) target = $region24
      $region23: #{_lambda_.3} parent=11 // pred_region
        _
      $region24: #{_lambda_.3} parent=11 // pred_fallthru
        _
      // Predicated region
      $region25: #{_lambda_.3} parent=11 // pred_check
        %p300 = pneg %p204
      $region26: #{_lambda_.3} parent=11 // pred_check_branch
        %302 = sbr.rel (%p300) target = $region28
      $region27: #{_lambda_.3} parent=11 // pred_region
        _
      $region28: #{_lambda_.3} parent=11 // pred_fallthru
        _
      // Predicated region
      $region29: #{_lambda_.3} parent=11 // pred_check
        %p303 = pneg %p225
      $region30: #{_lambda_.3} parent=11 // pred_check_branch
        %305 = sbr.rel (%p303) target = $region32
      $region31: #{_lambda_.3} parent=11 // pred_region
        _
      $region32: #{_lambda_.3} parent=11 // pred_fallthru
        _
      // Predicated region
      $region33: #{_lambda_.3} parent=11 // pred_check
        %p306 = pneg %p246
      $region34: #{_lambda_.3} parent=11 // pred_check_branch
        %308 = sbr.rel (%p306) target = $region36
      $region35: #{_lambda_.3} parent=11 // pred_region
        _
      $region36: #{_lambda_.3} parent=11 // pred_fallthru
        _
    $region12: #{_lambda_.3} parent=5 // pred_fallthru
      _
    %p309 = scmp.lt.s32.totalorder %s15, 2
    // Predicated region
    $region37: #{_lambda_.3} parent=5 // pred_check
      %p310 = pneg %p309
    $region38: #{_lambda_.3} parent=5 // pred_check_branch
      %312 = sbr.rel (%p310) target = $region40
    $region39: #{_lambda_.3} parent=5 // pred_region
      // Predicated region
      $region41: #{_lambda_.3} parent=39 // pred_check
        %p313 = pneg %p56
      $region42: #{_lambda_.3} parent=39 // pred_check_branch
        %315 = sbr.rel (%p313) target = $region44
      $region43: #{_lambda_.3} parent=39 // pred_region
        %p316 = scmp.lt.s32.totalorder %s22, 1
        %s317 = scalar_select %p316, %s22, 1
        %p318 = scmp.lt.s32.totalorder %s24, 0
        %s319 = scalar_select %p318, %s24, 0
        %s320 = sadd.s32 %s319, %s317
        %s321 = smul.addr %s320, 4
        %s322 = scalar_lea.vmem %s0, %s321
      $region44: #{_lambda_.3} parent=39 // pred_fallthru
        _
      // Predicated region
      $region45: #{_lambda_.3} parent=39 // pred_check
        %p323 = pneg %p84
      $region46: #{_lambda_.3} parent=39 // pred_check_branch
        %325 = sbr.rel (%p323) target = $region48
      $region47: #{_lambda_.3} parent=39 // pred_region
        %p326 = scmp.lt.s32.totalorder %s22, 1
        %s327 = scalar_select %p326, %s22, 1
        %p328 = scmp.lt.s32.totalorder %s23, 0
        %s329 = scalar_select %p328, %s23, 0
        %s330 = sadd.s32 %s329, %s327
        %s331 = smul.addr %s330, 4
        %s332 = scalar_lea.vmem %s1, %s331
      $region48: #{_lambda_.3} parent=39 // pred_fallthru
        _
      // Predicated region
      $region49: #{_lambda_.3} parent=39 // pred_check
        %p333 = pneg %p114
      $region50: #{_lambda_.3} parent=39 // pred_check_branch
        %335 = sbr.rel (%p333) target = $region52
      $region51: #{_lambda_.3} parent=39 // pred_region
        %s336 = smul.u32 8, %s23
        %p337 = scmp.lt.s32.totalorder %s22, 1
        %s338 = scalar_select %p337, %s22, 1
        %p339 = scmp.lt.s32.totalorder %s336, 7
        %s340 = scalar_select %p339, %s336, 7
        %p341 = scmp.lt.s32.totalorder %s24, 0
        %s342 = scalar_select %p341, %s24, 0
        %s343 = sadd.s32 %s342, %s340
        %s344 = smul.addr %s338, 8
        %s345 = sadd.s32 %s343, %s344
        %s346 = smul.addr %s345, 8
        %s347 = scalar_lea.vmem %s2, %s346
        %s348 = smul.u32 8, %s23
      $region52: #{_lambda_.3} parent=39 // pred_fallthru
        _
    $region40: #{_lambda_.3} parent=5 // pred_fallthru
      _
    %p349 = scmp.le.s32.totalorder 1, %s15
    %p350 = scmp.lt.s32.totalorder %s15, 3
    %p351 = pnand %p349, %p350
    %p352 = pneg %p351
    // Predicated region
    $region53: #{_lambda_.3} parent=5 // pred_check
      _
    $region54: #{_lambda_.3} parent=5 // pred_check_branch
      %354 = sbr.rel (%p351) target = $region56
    $region55: #{_lambda_.3} parent=5 // pred_region
      %s355 = ssub.s32 %s15, 1
      %p356 = scmp.lt.s32.totalorder %s25, 1
      %s357 = scalar_select %p356, %s25, 1
      %p358 = scmp.lt.s32.totalorder %s27, 0
      %s359 = scalar_select %p358, %s27, 0
      %s360 = sadd.s32 %s359, %s357
      %s361 = smul.addr %s360, 4
      %s362 = scalar_lea.vmem %s0, %s361
      %p363 = pneg %p62
      %p364 = pneg %p59
      %p365 = scmp.lt.s32.totalorder %s25, 1
      %s366 = scalar_select %p365, %s25, 1
      %p367 = scmp.lt.s32.totalorder %s26, 0
      %s368 = scalar_select %p367, %s26, 0
      %s369 = sadd.s32 %s368, %s366
      %s370 = smul.addr %s369, 4
      %s371 = scalar_lea.vmem %s1, %s370
      %p372 = pneg %p90
      %p373 = pneg %p87
      %s374 = smul.u32 8, %s26
      %p375 = scmp.lt.s32.totalorder %s25, 1
      %s376 = scalar_select %p375, %s25, 1
      %p377 = scmp.lt.s32.totalorder %s374, 7
      %s378 = scalar_select %p377, %s374, 7
      %p379 = scmp.lt.s32.totalorder %s27, 0
      %s380 = scalar_select %p379, %s27, 0
      %s381 = sadd.s32 %s380, %s378
      %s382 = smul.addr %s376, 8
      %s383 = sadd.s32 %s381, %s382
      %s384 = smul.addr %s383, 8
      %s385 = scalar_lea.vmem %s2, %s384
      %p386 = pneg %p120
      %p387 = pneg %p117
      %p388 = pneg %p141
      %p389 = pneg %p138
      %p390 = pneg %p162
      %p391 = pneg %p159
      %p392 = pneg %p183
      %p393 = pneg %p180
      %p394 = pneg %p204
      %p395 = pneg %p201
      %p396 = pneg %p225
      %p397 = pneg %p222
      %p398 = pneg %p246
      %p399 = pneg %p243
      %p400 = pneg %p276
      %p401 = pneg %p273
      %p402 = scmp.lt.s32.totalorder %s25, 1
      %s403 = scalar_select %p402, %s25, 1
      %p404 = scmp.lt.s32.totalorder %s26, 0
      %s405 = scalar_select %p404, %s26, 0
      %p406 = scmp.lt.s32.totalorder %s27, 0
      %s407 = scalar_select %p406, %s27, 0
      %s408 = sadd.s32 %s407, %s405
      %s409 = smul.addr %s403, 4
      %s410 = sadd.s32 %s408, %s409
      %s411 = smul.addr %s410, 8
      %s412 = scalar_lea.vmem %s9, %s411
      %p413 = scmp.lt.s32.totalorder %s25, 1
      %s414 = scalar_select %p413, %s25, 1
      %p415 = scmp.lt.s32.totalorder %s27, 0
      %s416 = scalar_select %p415, %s27, 0
      %s417 = sadd.s32 %s416, %s414
      %s418 = smul.addr %s417, 4
      %s419 = scalar_lea.vmem %s0, %s418
      %p420 = scmp.lt.s32.totalorder %s25, 1
      %s421 = scalar_select %p420, %s25, 1
      %p422 = scmp.lt.s32.totalorder %s26, 0
      %s423 = scalar_select %p422, %s26, 0
      %s424 = sadd.s32 %s423, %s421
      %s425 = smul.addr %s424, 4
      %s426 = scalar_lea.vmem %s1, %s425
      %s427 = smul.u32 8, %s26
      %p428 = scmp.lt.s32.totalorder %s25, 1
      %s429 = scalar_select %p428, %s25, 1
      %p430 = scmp.lt.s32.totalorder %s427, 7
      %s431 = scalar_select %p430, %s427, 7
      %p432 = scmp.lt.s32.totalorder %s27, 0
      %s433 = scalar_select %p432, %s27, 0
      %s434 = sadd.s32 %s433, %s431
      %s435 = smul.addr %s429, 8
      %s436 = sadd.s32 %s434, %s435
      %s437 = smul.addr %s436, 8
      %s438 = scalar_lea.vmem %s2, %s437
      %s439 = smul.u32 8, %s26
      %p440 = scmp.lt.s32.totalorder %s25, 1
      %s441 = scalar_select %p440, %s25, 1
      %p442 = scmp.lt.s32.totalorder %s26, 0
      %s443 = scalar_select %p442, %s26, 0
      %p444 = scmp.lt.s32.totalorder %s27, 0
      %s445 = scalar_select %p444, %s27, 0
      %s446 = sadd.s32 %s445, %s443
      %s447 = smul.addr %s441, 4
      %s448 = sadd.s32 %s446, %s447
      %s449 = smul.addr %s448, 8
      %s450 = scalar_lea.vmem %s9, %s449
      %v452 = vld [vmem:[%s419] sm:$0xf]
      %v453 = vld [vmem:[%s4] sm:$0xf]
      %v454 = vld [vmem:[%s4 + $0x4] sm:$0xf]
      %v455 = vld [vmem:[%s4 + $0x8] sm:$0xf]
      %v456 = vld [vmem:[%s4 + $0xc] sm:$0xf]
      %v457 = vld [vmem:[%s5] sm:$0x1]
      %v459 = vlaneseq
      %v460 = vshrl.u32 %v459, 7
      %v461 = vsub.s32 0, %v460
      %v462 = vrot.slane %v457, %v461
      %v468 = vunpack.c.l.b16 %v453
      %v469 = vunpack.c.l.b16 %v454
      %v470 = vunpack.c.l.b16 %v455
      %v471 = vunpack.c.l.b16 %v456
      %v472 = vpack.c.b16 %v469, %v468
      %v473 = vpack.c.b16 %v471, %v470
      %vm476 = vcmask 261120
      %v478 = vsel %vm476, %v452, 0
      %480 = vmatprep.subr.bf16.mxu0 0
      %481 = vmatpush1.bf16.msra.mxu0 %v472
      %482 = vmatprep.subr.bf16.mxu0 0
      %483 = vmatpush1.bf16.msra.mxu0 %v473
      %484 = vmatprep.subr.bf16.mxu0 0
      %485 = vmatpush1.bf16.msra.mxu0 0
      %486 = vmatprep.subr.bf16.mxu0 0
      %487 = vmatpush1.bf16.msra.mxu0 0
      %488 = vmatprep.subr.bf16.mxu0 0
      %489 = vmatpush1.bf16.msra.mxu0 0
      %490 = vmatprep.subr.bf16.mxu0 0
      %491 = vmatpush1.bf16.msra.mxu0 0
      %492 = vmatprep.subr.bf16.mxu0 0
      %493 = vmatpush1.bf16.msra.mxu0 0
      %494 = vmatprep.subr.bf16.mxu0 0
      %495 = vmatpush1.bf16.msra.mxu0 0
      %496 = vmatprep.subr.bf16.mxu0 0
      %497 = vmatpush1.bf16.msra.mxu0 0
      %498 = vmatprep.subr.bf16.mxu0 0
      %499 = vmatpush1.bf16.msra.mxu0 0
      %500 = vmatprep.subr.bf16.mxu0 0
      %501 = vmatpush1.bf16.msra.mxu0 0
      %502 = vmatprep.subr.bf16.mxu0 0
      %503 = vmatpush1.bf16.msra.mxu0 0
      %504 = vmatprep.subr.bf16.mxu0 0
      %505 = vmatpush1.bf16.msra.mxu0 0
      %506 = vmatprep.subr.bf16.mxu0 0
      %507 = vmatpush1.bf16.msra.mxu0 0
      %508 = vmatprep.subr.bf16.mxu0 0
      %509 = vmatpush1.bf16.msra.mxu0 0
      %510 = vmatprep.subr.bf16.mxu0 0
      %511 = vmatpush1.bf16.msra.mxu0 0
      %512 = vmatprep.mubr.bf16.mxu0 0
      %513 = vmatmul.mubr.bf16.gmra.mrb[0].mxu0 %v478
      %v514 = vpop.f32.mrb[0].mxu0
      %v515 = vadd.f32 %v462, %v514
      %v516 = vpop.f32.mrb[0].mxu0
      %v517 = vpop.f32.mrb[0].mxu0
      %v518 = vpop.f32.mrb[0].mxu0
      %519 = vdwg.mxu0
      %v520 = vld [vmem:[%s8] sm:$0xf]
      %v521 = vld [vmem:[%s426] sm:$0xf]
      %v523 = vsel %vm476, %v521, 0
      %525 = vmatprep.subr.bf16.mxu0 0
      %526 = vmatpush1.bf16.msra.mxu0 %v472
      %527 = vmatprep.subr.bf16.mxu0 0
      %528 = vmatpush1.bf16.msra.mxu0 %v473
      %529 = vmatprep.subr.bf16.mxu0 0
      %530 = vmatpush1.bf16.msra.mxu0 0
      %531 = vmatprep.subr.bf16.mxu0 0
      %532 = vmatpush1.bf16.msra.mxu0 0
      %533 = vmatprep.subr.bf16.mxu0 0
      %534 = vmatpush1.bf16.msra.mxu0 0
      %535 = vmatprep.subr.bf16.mxu0 0
      %536 = vmatpush1.bf16.msra.mxu0 0
      %537 = vmatprep.subr.bf16.mxu0 0
      %538 = vmatpush1.bf16.msra.mxu0 0
      %539 = vmatprep.subr.bf16.mxu0 0
      %540 = vmatpush1.bf16.msra.mxu0 0
      %541 = vmatprep.subr.bf16.mxu0 0
      %542 = vmatpush1.bf16.msra.mxu0 0
      %543 = vmatprep.subr.bf16.mxu0 0
      %544 = vmatpush1.bf16.msra.mxu0 0
      %545 = vmatprep.subr.bf16.mxu0 0
      %546 = vmatpush1.bf16.msra.mxu0 0
      %547 = vmatprep.subr.bf16.mxu0 0
      %548 = vmatpush1.bf16.msra.mxu0 0
      %549 = vmatprep.subr.bf16.mxu0 0
      %550 = vmatpush1.bf16.msra.mxu0 0
      %551 = vmatprep.subr.bf16.mxu0 0
      %552 = vmatpush1.bf16.msra.mxu0 0
      %553 = vmatprep.subr.bf16.mxu0 0
      %554 = vmatpush1.bf16.msra.mxu0 0
      %555 = vmatprep.subr.bf16.mxu0 0
      %556 = vmatpush1.bf16.msra.mxu0 0
      %557 = vmatprep.mubr.bf16.mxu0 0
      %558 = vmatmul.mubr.bf16.gmra.mrb[0].mxu0 %v523
      %v559 = vpop.f32.mrb[0].mxu0
      %v560 = vadd.f32 0.0, %v559
      %v561 = vpop.f32.mrb[0].mxu0
      %v562 = vpop.f32.mrb[0].mxu0
      %v563 = vpop.f32.mrb[0].mxu0
      %564 = vdwg.mxu0
      %v567 = vunpack.c.l.s4 1966171168
      %v568 = vunpack.c.0.s8 %v567
      %v569 = vlaneseq
      %v570 = vshrl.u32 %v569, 7
      %v571 = vsub.s32 %v568, %v570
      %v572 = vrot.slane %v521, %v571
      %v573 = vcombine.high %v572, %v572
      %v575 = vunpack.c.l.s4 1966171168
      %v576 = vunpack.c.0.s8 %v575
      %v577 = vlaneseq
      %v578 = vshrl.u32 %v577, 7
      %v579 = vsub.s32 %v576, %v578
      %v580 = vrot.slane %v572, %v579
      %v582 = vunpack.c.l.s4 1966171168
      %v583 = vunpack.c.0.s8 %v582
      %v584 = vlaneseq
      %v585 = vshrl.u32 %v584, 7
      %v586 = vsub.s32 %v583, %v585
      %v587 = vrot.slane %v573, %v586
      %v588 = vcombine.high %v580, %v580
      %v589 = vcombine.high %v587, %v587
      %v590 = vunpack.i.l.s16 %v580
      %v591 = vunpack.i.h.s16 %v580
      %v592 = vunpack.i.l.s16 %v587
      %v593 = vunpack.i.h.s16 %v587
      %v594 = vunpack.i.l.s16 %v588
      %v595 = vunpack.i.h.s16 %v588
      %v596 = vunpack.i.l.s16 %v589
      %v597 = vunpack.i.h.s16 %v589
      %v598 = vpack.i.b16 %v590, %v590
      %v599 = vpack.i.b16 %v591, %v591
      %v600 = vpack.i.b16 %v592, %v592
      %v601 = vpack.i.b16 %v593, %v593
      %v602 = vpack.i.b16 %v594, %v594
      %v603 = vpack.i.b16 %v595, %v595
      %v604 = vpack.i.b16 %v596, %v596
      %v605 = vpack.i.b16 %v597, %v597
      %v606 = vlaneseq
      %v607 = vshrl.u32 %v606, 7
      %v608 = vsub.s32 0, %v607
      %v609 = vrot.slane %v598, %v608
      %v610 = vlaneseq
      %v611 = vshrl.u32 %v610, 7
      %v612 = vsub.s32 0, %v611
      %v613 = vrot.slane %v599, %v612
      %v614 = vlaneseq
      %v615 = vshrl.u32 %v614, 7
      %v616 = vsub.s32 0, %v615
      %v617 = vrot.slane %v600, %v616
      %v618 = vlaneseq
      %v619 = vshrl.u32 %v618, 7
      %v620 = vsub.s32 0, %v619
      %v621 = vrot.slane %v601, %v620
      %v622 = vlaneseq
      %v623 = vshrl.u32 %v622, 7
      %v624 = vsub.s32 0, %v623
      %v625 = vrot.slane %v602, %v624
      %v626 = vlaneseq
      %v627 = vshrl.u32 %v626, 7
      %v628 = vsub.s32 0, %v627
      %v629 = vrot.slane %v603, %v628
      %v630 = vlaneseq
      %v631 = vshrl.u32 %v630, 7
      %v632 = vsub.s32 0, %v631
      %v633 = vrot.slane %v604, %v632
      %v634 = vlaneseq
      %v635 = vshrl.u32 %v634, 7
      %v636 = vsub.s32 0, %v635
      %v637 = vrot.slane %v605, %v636
      %v639 = vpack.i.b16 %v609, %v609
      %v641 = vlaneseq
      %v642 = vshrl.u32 %v641, 7
      %v643 = vsub.s32 0, %v642
      %v644 = vrot.slane %v639, %v643
      %v646 = vpack.i.b16 %v613, %v613
      %v648 = vlaneseq
      %v649 = vshrl.u32 %v648, 7
      %v650 = vsub.s32 0, %v649
      %v651 = vrot.slane %v646, %v650
      %v653 = vpack.i.b16 %v617, %v617
      %v655 = vlaneseq
      %v656 = vshrl.u32 %v655, 7
      %v657 = vsub.s32 0, %v656
      %v658 = vrot.slane %v653, %v657
      %v660 = vpack.i.b16 %v621, %v621
      %v662 = vlaneseq
      %v663 = vshrl.u32 %v662, 7
      %v664 = vsub.s32 0, %v663
      %v665 = vrot.slane %v660, %v664
      %v667 = vpack.i.b16 %v625, %v625
      %v669 = vlaneseq
      %v670 = vshrl.u32 %v669, 7
      %v671 = vsub.s32 0, %v670
      %v672 = vrot.slane %v667, %v671
      %v674 = vpack.i.b16 %v629, %v629
      %v676 = vlaneseq
      %v677 = vshrl.u32 %v676, 7
      %v678 = vsub.s32 0, %v677
      %v679 = vrot.slane %v674, %v678
      %v681 = vpack.i.b16 %v633, %v633
      %v683 = vlaneseq
      %v684 = vshrl.u32 %v683, 7
      %v685 = vsub.s32 0, %v684
      %v686 = vrot.slane %v681, %v685
      %v688 = vpack.i.b16 %v637, %v637
      %v690 = vlaneseq
      %v691 = vshrl.u32 %v690, 7
      %v692 = vsub.s32 0, %v691
      %v693 = vrot.slane %v688, %v692
      %v694 = vmul.bf16 %v644, %v452
      %v695 = vmul.bf16 %v651, %v452
      %v696 = vmul.bf16 %v658, %v452
      %v697 = vmul.bf16 %v665, %v452
      %v698 = vmul.bf16 %v672, %v452
      %v699 = vmul.bf16 %v679, %v452
      %v700 = vmul.bf16 %v686, %v452
      %v701 = vmul.bf16 %v693, %v452
      %v702 = vld [vmem:[%s3] sm:$0xf]
      %v703 = vld [vmem:[%s3 + $0x4] sm:$0xf]
      %v704 = vld [vmem:[%s3 + $0x8] sm:$0xf]
      %v705 = vld [vmem:[%s3 + $0xc] sm:$0xf]
      %v714 = vunpack.c.l.b16 %v694
      %v715 = vunpack.c.l.b16 %v695
      %v716 = vunpack.c.l.b16 %v696
      %v717 = vunpack.c.l.b16 %v697
      %v718 = vunpack.c.l.b16 %v698
      %v719 = vunpack.c.l.b16 %v699
      %v720 = vunpack.c.l.b16 %v700
      %v721 = vunpack.c.l.b16 %v701
      %v722 = vpack.c.b16 %v715, %v714
      %v723 = vpack.c.b16 %v717, %v716
      %v724 = vpack.c.b16 %v719, %v718
      %v725 = vpack.c.b16 %v721, %v720
      %v730 = vunpack.c.l.b16 %v702
      %v731 = vunpack.c.l.b16 %v703
      %v732 = vunpack.c.l.b16 %v704
      %v733 = vunpack.c.l.b16 %v705
      %v734 = vpack.c.b16 %v731, %v730
      %v735 = vpack.c.b16 %v733, %v732
      %v739 = vsel %vm476, %v722, 0
      %v742 = vsel %vm476, %v723, 0
      %v745 = vsel %vm476, %v724, 0
      %v748 = vsel %vm476, %v725, 0
      %750 = vmatprep.subr.bf16.mxu0 0
      %751 = vmatpush1.bf16.msra.mxu0 %v734
      %752 = vmatprep.subr.bf16.mxu0 0
      %753 = vmatpush1.bf16.msra.mxu0 %v735
      %754 = vmatprep.subr.bf16.mxu0 0
      %755 = vmatpush1.bf16.msra.mxu0 0
      %756 = vmatprep.subr.bf16.mxu0 0
      %757 = vmatpush1.bf16.msra.mxu0 0
      %758 = vmatprep.subr.bf16.mxu0 0
      %759 = vmatpush1.bf16.msra.mxu0 0
      %760 = vmatprep.subr.bf16.mxu0 0
      %761 = vmatpush1.bf16.msra.mxu0 0
      %762 = vmatprep.subr.bf16.mxu0 0
      %763 = vmatpush1.bf16.msra.mxu0 0
      %764 = vmatprep.subr.bf16.mxu0 0
      %765 = vmatpush1.bf16.msra.mxu0 0
      %766 = vmatprep.subr.bf16.mxu0 0
      %767 = vmatpush1.bf16.msra.mxu0 0
      %768 = vmatprep.subr.bf16.mxu0 0
      %769 = vmatpush1.bf16.msra.mxu0 0
      %770 = vmatprep.subr.bf16.mxu0 0
      %771 = vmatpush1.bf16.msra.mxu0 0
      %772 = vmatprep.subr.bf16.mxu0 0
      %773 = vmatpush1.bf16.msra.mxu0 0
      %774 = vmatprep.subr.bf16.mxu0 0
      %775 = vmatpush1.bf16.msra.mxu0 0
      %776 = vmatprep.subr.bf16.mxu0 0
      %777 = vmatpush1.bf16.msra.mxu0 0
      %778 = vmatprep.subr.bf16.mxu0 0
      %779 = vmatpush1.bf16.msra.mxu0 0
      %780 = vmatprep.subr.bf16.mxu0 0
      %781 = vmatpush1.bf16.msra.mxu0 0
      %782 = vmatprep.mubr.bf16.mxu0 0
      %783 = vmatmul.mubr.bf16.gmra.mrb[0].mxu0 %v739
      %v784 = vpop.f32.mrb[0].mxu0
      %v785 = vadd.f32 0.0, %v784
      %v786 = vpop.f32.mrb[0].mxu0
      %v787 = vpop.f32.mrb[0].mxu0
      %v788 = vadd.f32 0.0, %v787
      %v789 = vpop.f32.mrb[0].mxu0
      %790 = vmatprep.mubr.bf16.mxu0 0
      %791 = vmatmul.mubr.bf16.gmra.mrb[0].mxu0 %v742
      %v792 = vpop.f32.mrb[0].mxu0
      %v793 = vadd.f32 0.0, %v792
      %v794 = vpop.f32.mrb[0].mxu0
      %v795 = vpop.f32.mrb[0].mxu0
      %v796 = vadd.f32 0.0, %v795
      %v797 = vpop.f32.mrb[0].mxu0
      %798 = vmatprep.mubr.bf16.mxu0 0
      %799 = vmatmul.mubr.bf16.gmra.mrb[0].mxu0 %v745
      %v800 = vpop.f32.mrb[0].mxu0
      %v801 = vadd.f32 0.0, %v800
      %v802 = vpop.f32.mrb[0].mxu0
      %v803 = vpop.f32.mrb[0].mxu0
      %v804 = vadd.f32 0.0, %v803
      %v805 = vpop.f32.mrb[0].mxu0
      %806 = vmatprep.mubr.bf16.mxu0 0
      %807 = vmatmul.mubr.bf16.gmra.mrb[0].mxu0 %v748
      %v808 = vpop.f32.mrb[0].mxu0
      %v809 = vadd.f32 0.0, %v808
      %v810 = vpop.f32.mrb[0].mxu0
      %v811 = vpop.f32.mrb[0].mxu0
      %v812 = vadd.f32 0.0, %v811
      %v813 = vpop.f32.mrb[0].mxu0
      %814 = vdwg.mxu0
      %v815 = vadd.f32 %v785, %v515
      %v816 = vadd.f32 %v788, %v515
      %v817 = vadd.f32 %v793, %v515
      %v818 = vadd.f32 %v796, %v515
      %v819 = vadd.f32 %v801, %v515
      %v820 = vadd.f32 %v804, %v515
      %v821 = vadd.f32 %v809, %v515
      %v822 = vadd.f32 %v812, %v515
      %v824 = vcombine.high %v560, %v560
      %v826 = vunpack.c.l.s4 1966171168
      %v827 = vunpack.c.0.s8 %v826
      %v828 = vlaneseq
      %v829 = vshrl.u32 %v828, 7
      %v830 = vsub.s32 %v827, %v829
      %v831 = vrot.slane %v560, %v830
      %v833 = vunpack.c.l.s4 1966171168
      %v834 = vunpack.c.0.s8 %v833
      %v835 = vlaneseq
      %v836 = vshrl.u32 %v835, 7
      %v837 = vsub.s32 %v834, %v836
      %v838 = vrot.slane %v824, %v837
      %v839 = vcombine.high %v831, %v831
      %v840 = vcombine.high %v838, %v838
      %v842 = vunpack.c.l.s4 1966171168
      %v843 = vunpack.c.0.s8 %v842
      %v844 = vlaneseq
      %v845 = vshrl.u32 %v844, 7
      %v846 = vsub.s32 %v843, %v845
      %v847 = vrot.slane %v831, %v846
      %v849 = vunpack.c.l.s4 1966171168
      %v850 = vunpack.c.0.s8 %v849
      %v851 = vlaneseq
      %v852 = vshrl.u32 %v851, 7
      %v853 = vsub.s32 %v850, %v852
      %v854 = vrot.slane %v838, %v853
      %v856 = vunpack.c.l.s4 1966171168
      %v857 = vunpack.c.0.s8 %v856
      %v858 = vlaneseq
      %v859 = vshrl.u32 %v858, 7
      %v860 = vsub.s32 %v857, %v859
      %v861 = vrot.slane %v839, %v860
      %v863 = vunpack.c.l.s4 1966171168
      %v864 = vunpack.c.0.s8 %v863
      %v865 = vlaneseq
      %v866 = vshrl.u32 %v865, 7
      %v867 = vsub.s32 %v864, %v866
      %v868 = vrot.slane %v840, %v867
      %v869 = vcombine.high %v847, %v847
      %v870 = vcombine.high %v854, %v854
      %v871 = vcombine.high %v861, %v861
      %v872 = vcombine.high %v868, %v868
      %v873 = vlaneseq
      %v874 = vshrl.u32 %v873, 7
      %v875 = vsub.s32 0, %v874
      %v876 = vrot.slane %v847, %v875
      %v877 = vlaneseq
      %v878 = vshrl.u32 %v877, 7
      %v879 = vsub.s32 0, %v878
      %v880 = vrot.slane %v861, %v879
      %v881 = vlaneseq
      %v882 = vshrl.u32 %v881, 7
      %v883 = vsub.s32 0, %v882
      %v884 = vrot.slane %v869, %v883
      %v885 = vlaneseq
      %v886 = vshrl.u32 %v885, 7
      %v887 = vsub.s32 0, %v886
      %v888 = vrot.slane %v871, %v887
      %v889 = vlaneseq
      %v890 = vshrl.u32 %v889, 7
      %v891 = vsub.s32 0, %v890
      %v892 = vrot.slane %v854, %v891
      %v893 = vlaneseq
      %v894 = vshrl.u32 %v893, 7
      %v895 = vsub.s32 0, %v894
      %v896 = vrot.slane %v868, %v895
      %v897 = vlaneseq
      %v898 = vshrl.u32 %v897, 7
      %v899 = vsub.s32 0, %v898
      %v900 = vrot.slane %v870, %v899
      %v901 = vlaneseq
      %v902 = vshrl.u32 %v901, 7
      %v903 = vsub.s32 0, %v902
      %v904 = vrot.slane %v872, %v903
      %v913 = vsub.f32 %v815, %v876
      %v914 = vsub.f32 %v816, %v880
      %v915 = vsub.f32 %v817, %v884
      %v916 = vsub.f32 %v818, %v888
      %v917 = vsub.f32 %v819, %v892
      %v918 = vsub.f32 %v820, %v896
      %v919 = vsub.f32 %v821, %v900
      %v920 = vsub.f32 %v822, %v904
      %v921 = vmul.f32 %v913, 0.5
      %v922 = vmul.f32 %v914, 0.5
      %v923 = vmul.f32 %v915, 0.5
      %v924 = vmul.f32 %v916, 0.5
      %v925 = vmul.f32 %v917, 0.5
      %v926 = vmul.f32 %v918, 0.5
      %v927 = vmul.f32 %v919, 0.5
      %v928 = vmul.f32 %v920, 0.5
      %v929 = vmul.f32 %v913, %v913
      %v930 = vmul.f32 %v914, %v914
      %v931 = vmul.f32 %v915, %v915
      %v932 = vmul.f32 %v916, %v916
      %v933 = vmul.f32 %v917, %v917
      %v934 = vmul.f32 %v918, %v918
      %v935 = vmul.f32 %v919, %v919
      %v936 = vmul.f32 %v920, %v920
      %v937 = vmul.f32 %v929, %v913
      %v938 = vmul.f32 %v930, %v914
      %v939 = vmul.f32 %v931, %v915
      %v940 = vmul.f32 %v932, %v916
      %v941 = vmul.f32 %v933, %v917
      %v942 = vmul.f32 %v934, %v918
      %v943 = vmul.f32 %v935, %v919
      %v944 = vmul.f32 %v936, %v920
      %v945 = vmul.f32 %v937, 0.044715
      %v946 = vmul.f32 %v938, 0.044715
      %v947 = vmul.f32 %v939, 0.044715
      %v948 = vmul.f32 %v940, 0.044715
      %v949 = vmul.f32 %v941, 0.044715
      %v950 = vmul.f32 %v942, 0.044715
      %v951 = vmul.f32 %v943, 0.044715
      %v952 = vmul.f32 %v944, 0.044715
      %v953 = vadd.f32 %v913, %v945
      %v954 = vadd.f32 %v914, %v946
      %v955 = vadd.f32 %v915, %v947
      %v956 = vadd.f32 %v916, %v948
      %v957 = vadd.f32 %v917, %v949
      %v958 = vadd.f32 %v918, %v950
      %v959 = vadd.f32 %v919, %v951
      %v960 = vadd.f32 %v920, %v952
      %v961 = vmul.f32 %v953, 0.7978846
      %v962 = vmul.f32 %v954, 0.7978846
      %v963 = vmul.f32 %v955, 0.7978846
      %v964 = vmul.f32 %v956, 0.7978846
      %v965 = vmul.f32 %v957, 0.7978846
      %v966 = vmul.f32 %v958, 0.7978846
      %v967 = vmul.f32 %v959, 0.7978846
      %v968 = vmul.f32 %v960, 0.7978846
      %v969 = vtanh.pop %v961
      %v970 = vtanh.pop %v962
      %v971 = vtanh.pop %v963
      %v972 = vtanh.pop %v964
      %v973 = vtanh.pop %v965
      %v974 = vtanh.pop %v966
      %v975 = vtanh.pop %v967
      %v976 = vtanh.pop %v968
      %v977 = vadd.f32 %v969, 1.0
      %v978 = vadd.f32 %v970, 1.0
      %v979 = vadd.f32 %v971, 1.0
      %v980 = vadd.f32 %v972, 1.0
      %v981 = vadd.f32 %v973, 1.0
      %v982 = vadd.f32 %v974, 1.0
      %v983 = vadd.f32 %v975, 1.0
      %v984 = vadd.f32 %v976, 1.0
      %v985 = vmul.f32 %v921, %v977
      %v986 = vmul.f32 %v922, %v978
      %v987 = vmul.f32 %v923, %v979
      %v988 = vmul.f32 %v924, %v980
      %v989 = vmul.f32 %v925, %v981
      %v990 = vmul.f32 %v926, %v982
      %v991 = vmul.f32 %v927, %v983
      %v992 = vmul.f32 %v928, %v984
      %v993 = vpack.c.bf16 %v985, %v985
      %v994 = vpack.c.bf16 %v986, %v986
      %v995 = vpack.c.bf16 %v987, %v987
      %v996 = vpack.c.bf16 %v988, %v988
      %v997 = vpack.c.bf16 %v989, %v989
      %v998 = vpack.c.bf16 %v990, %v990
      %v999 = vpack.c.bf16 %v991, %v991
      %v1000 = vpack.c.bf16 %v992, %v992
      %s1001 = smul.u32 0, 8
      %s1002 = scalar_lea.vmem %s438, %s1001
      %v1003 = vld [vmem:[%s1002] sm:$0xff]
      %v1004 = vld [vmem:[%s1002 + $0x8] sm:$0xff]
      %v1005 = vld [vmem:[%s1002 + $0x10] sm:$0xff]
      %v1006 = vld [vmem:[%s1002 + $0x18] sm:$0xff]
      %v1007 = vld [vmem:[%s1002 + $0x20] sm:$0xff]
      %v1008 = vld [vmem:[%s1002 + $0x28] sm:$0xff]
      %v1009 = vld [vmem:[%s1002 + $0x30] sm:$0xff]
      %v1010 = vld [vmem:[%s1002 + $0x38] sm:$0xff]
      %v1011 = vpack.c.bf16 %v1003, %v1003
      %v1012 = vpack.c.bf16 %v1004, %v1004
      %v1013 = vpack.c.bf16 %v1005, %v1005
      %v1014 = vpack.c.bf16 %v1006, %v1006
      %v1015 = vpack.c.bf16 %v1007, %v1007
      %v1016 = vpack.c.bf16 %v1008, %v1008
      %v1017 = vpack.c.bf16 %v1009, %v1009
      %v1018 = vpack.c.bf16 %v1010, %v1010
      %v1019 = vld [vmem:[%s6] sm:$0x3]
      %v1020 = vld [vmem:[%s7] sm:$0x3]
      %v1029 = vunpack.c.l.b16 %v1011
      %v1030 = vunpack.c.l.b16 %v1012
      %v1031 = vunpack.c.l.b16 %v1013
      %v1032 = vunpack.c.l.b16 %v1014
      %v1033 = vunpack.c.l.b16 %v1015
      %v1034 = vunpack.c.l.b16 %v1016
      %v1035 = vunpack.c.l.b16 %v1017
      %v1036 = vunpack.c.l.b16 %v1018
      %v1037 = vpack.c.b16 %v1030, %v1029
      %v1038 = vpack.c.b16 %v1032, %v1031
      %v1039 = vpack.c.b16 %v1034, %v1033
      %v1040 = vpack.c.b16 %v1036, %v1035
      %vm1041 = vcmask 130048
      %v1043 = vsel %vm1041, %v1020, 0
      %v1046 = vsel %vm1041, %v1037, 0
      %v1049 = vsel %vm1041, %v1038, 0
      %v1052 = vsel %vm1041, %v1039, 0
      %v1055 = vsel %vm1041, %v1040, 0
      %1057 = vmatprep.subr.bf16.mxu0 0
      %1058 = vmatpush1.bf16.xpose.msra.mxu0 %v1046
      %1059 = vmatprep.subr.bf16.mxu0 0
      %1060 = vmatpush1.bf16.xpose.msra.mxu0 %v1049
      %1061 = vmatprep.subr.bf16.mxu0 0
      %1062 = vmatpush1.bf16.xpose.msra.mxu0 %v1052
      %1063 = vmatprep.subr.bf16.mxu0 0
      %1064 = vmatpush1.bf16.xpose.msra.mxu0 %v1055
      %1065 = vmatprep.subr.bf16.mxu0 0
      %1066 = vmatpush1.bf16.xpose.msra.mxu0 0
      %1067 = vmatprep.subr.bf16.mxu0 0
      %1068 = vmatpush1.bf16.xpose.msra.mxu0 0
      %1069 = vmatprep.subr.bf16.mxu0 0
      %1070 = vmatpush1.bf16.xpose.msra.mxu0 0
      %1071 = vmatprep.subr.bf16.mxu0 0
      %1072 = vmatpush1.bf16.xpose.msra.mxu0 0
      %1073 = vmatprep.subr.bf16.mxu0 0
      %1074 = vmatpush1.bf16.xpose.msra.mxu0 0
      %1075 = vmatprep.subr.bf16.mxu0 0
      %1076 = vmatpush1.bf16.xpose.msra.mxu0 0
      %1077 = vmatprep.subr.bf16.mxu0 0
      %1078 = vmatpush1.bf16.xpose.msra.mxu0 0
      %1079 = vmatprep.subr.bf16.mxu0 0
      %1080 = vmatpush1.bf16.xpose.msra.mxu0 0
      %1081 = vmatprep.subr.bf16.mxu0 0
      %1082 = vmatpush1.bf16.xpose.msra.mxu0 0
      %1083 = vmatprep.subr.bf16.mxu0 0
      %1084 = vmatpush1.bf16.xpose.msra.mxu0 0
      %1085 = vmatprep.subr.bf16.mxu0 0
      %1086 = vmatpush1.bf16.xpose.msra.mxu0 0
      %1087 = vmatprep.subr.bf16.mxu0 0
      %1088 = vmatpush1.bf16.xpose.msra.mxu0 0
      %1089 = vmatprep.mubr.bf16.mxu0 0
      %1090 = vmatmul.mubr.bf16.gmra.mrb[0].mxu0 %v1043
      %v1091 = vpop.f32.mrb[0].mxu0
      %v1092 = vadd.f32 0.0, %v1091
      %v1093 = vpop.f32.mrb[0].mxu0
      %v1094 = vpop.f32.mrb[0].mxu0
      %v1095 = vpop.f32.mrb[0].mxu0
      %1096 = vdwg.mxu0
      %v1105 = vunpack.c.l.b16 %v993
      %v1106 = vunpack.c.l.b16 %v994
      %v1107 = vunpack.c.l.b16 %v995
      %v1108 = vunpack.c.l.b16 %v996
      %v1109 = vunpack.c.l.b16 %v997
      %v1110 = vunpack.c.l.b16 %v998
      %v1111 = vunpack.c.l.b16 %v999
      %v1112 = vunpack.c.l.b16 %v1000
      %v1113 = vpack.c.b16 %v1106, %v1105
      %v1114 = vpack.c.b16 %v1108, %v1107
      %v1115 = vpack.c.b16 %v1110, %v1109
      %v1116 = vpack.c.b16 %v1112, %v1111
      %v1118 = vsel %vm1041, %v1019, 0
      %v1121 = vsel %vm1041, %v1113, 0
      %v1124 = vsel %vm1041, %v1114, 0
      %v1127 = vsel %vm1041, %v1115, 0
      %v1130 = vsel %vm1041, %v1116, 0
      %1132 = vmatprep.subr.bf16.mxu0 0
      %1133 = vmatpush1.bf16.xpose.msra.mxu0 %v1121
      %1134 = vmatprep.subr.bf16.mxu0 0
      %1135 = vmatpush1.bf16.xpose.msra.mxu0 %v1124
      %1136 = vmatprep.subr.bf16.mxu0 0
      %1137 = vmatpush1.bf16.xpose.msra.mxu0 %v1127
      %1138 = vmatprep.subr.bf16.mxu0 0
      %1139 = vmatpush1.bf16.xpose.msra.mxu0 %v1130
      %1140 = vmatprep.subr.bf16.mxu0 0
      %1141 = vmatpush1.bf16.xpose.msra.mxu0 0
      %1142 = vmatprep.subr.bf16.mxu0 0
      %1143 = vmatpush1.bf16.xpose.msra.mxu0 0
      %1144 = vmatprep.subr.bf16.mxu0 0
      %1145 = vmatpush1.bf16.xpose.msra.mxu0 0
      %1146 = vmatprep.subr.bf16.mxu0 0
      %1147 = vmatpush1.bf16.xpose.msra.mxu0 0
      %1148 = vmatprep.subr.bf16.mxu0 0
      %1149 = vmatpush1.bf16.xpose.msra.mxu0 0
      %1150 = vmatprep.subr.bf16.mxu0 0
      %1151 = vmatpush1.bf16.xpose.msra.mxu0 0
      %1152 = vmatprep.subr.bf16.mxu0 0
      %1153 = vmatpush1.bf16.xpose.msra.mxu0 0
      %1154 = vmatprep.subr.bf16.mxu0 0
      %1155 = vmatpush1.bf16.xpose.msra.mxu0 0
      %1156 = vmatprep.subr.bf16.mxu0 0
      %1157 = vmatpush1.bf16.xpose.msra.mxu0 0
      %1158 = vmatprep.subr.bf16.mxu0 0
      %1159 = vmatpush1.bf16.xpose.msra.mxu0 0
      %1160 = vmatprep.subr.bf16.mxu0 0
      %1161 = vmatpush1.bf16.xpose.msra.mxu0 0
      %1162 = vmatprep.subr.bf16.mxu0 0
      %1163 = vmatpush1.bf16.xpose.msra.mxu0 0
      %1164 = vmatprep.mubr.bf16.mxu0 0
      %1165 = vmatmul.mubr.bf16.gmra.mrb[0].mxu0 %v1118
      %v1166 = vpop.f32.mrb[0].mxu0
      %v1167 = vadd.f32 %v1092, %v1166
      %v1168 = vpop.f32.mrb[0].mxu0
      %v1169 = vpop.f32.mrb[0].mxu0
      %v1170 = vpop.f32.mrb[0].mxu0
      %1171 = vdwg.mxu0
      %1173 = vset.pattern.permute.xlu0 0
      %1174 = vperm.xlu0 %1173, %v520
      %v1175 = vpop.permute.xlu0 %1174
      %v1177 = vadd.f32 %v1167, %v1175
      %1179 = vrot.lane.b32.xlu0 %v1177, 120
      %v1180 = vpop.permute.xlu0 %1179
      %1182 = vrot.lane.b32.xlu0 %v1177, 112
      %v1183 = vpop.permute.xlu0 %1182
      %1185 = vrot.lane.b32.xlu0 %v1177, 104
      %v1186 = vpop.permute.xlu0 %1185
      %1188 = vrot.lane.b32.xlu0 %v1177, 96
      %v1189 = vpop.permute.xlu0 %1188
      %1191 = vrot.lane.b32.xlu0 %v1177, 88
      %v1192 = vpop.permute.xlu0 %1191
      %1194 = vrot.lane.b32.xlu0 %v1177, 80
      %v1195 = vpop.permute.xlu0 %1194
      %1197 = vrot.lane.b32.xlu0 %v1177, 72
      %v1198 = vpop.permute.xlu0 %1197
      %v1200 = vcombine.low %v1177, %v1183
      %v1202 = vunpack.c.l.s4 1983009808
      %v1203 = vunpack.c.0.s8 %v1202
      %v1204 = vlaneseq
      %v1205 = vshrl.u32 %v1204, 7
      %v1206 = vsub.s32 %v1203, %v1205
      %v1207 = vrot.slane %v1200, %v1206
      %v1208 = vcombine.low %v1180, %v1186
      %v1210 = vunpack.c.l.s4 1983009808
      %v1211 = vunpack.c.0.s8 %v1210
      %v1212 = vlaneseq
      %v1213 = vshrl.u32 %v1212, 7
      %v1214 = vsub.s32 %v1211, %v1213
      %v1215 = vrot.slane %v1208, %v1214
      %v1216 = vcombine.low %v1189, %v1195
      %v1218 = vunpack.c.l.s4 1983009808
      %v1219 = vunpack.c.0.s8 %v1218
      %v1220 = vlaneseq
      %v1221 = vshrl.u32 %v1220, 7
      %v1222 = vsub.s32 %v1219, %v1221
      %v1223 = vrot.slane %v1216, %v1222
      %v1224 = vcombine.low %v1192, %v1198
      %v1226 = vunpack.c.l.s4 1983009808
      %v1227 = vunpack.c.0.s8 %v1226
      %v1228 = vlaneseq
      %v1229 = vshrl.u32 %v1228, 7
      %v1230 = vsub.s32 %v1227, %v1229
      %v1231 = vrot.slane %v1224, %v1230
      %v1232 = vcombine.low %v1207, %v1215
      %v1233 = vcombine.high %v1207, %v1215
      %v1235 = vunpack.c.l.s4 1934713408
      %v1236 = vunpack.c.0.s8 %v1235
      %v1237 = vlaneseq
      %v1238 = vshrl.u32 %v1237, 7
      %v1239 = vsub.s32 %v1236, %v1238
      %v1240 = vrot.slane %v1232, %v1239
      %v1242 = vunpack.c.l.s4 1934713408
      %v1243 = vunpack.c.0.s8 %v1242
      %v1244 = vlaneseq
      %v1245 = vshrl.u32 %v1244, 7
      %v1246 = vsub.s32 %v1243, %v1245
      %v1247 = vrot.slane %v1233, %v1246
      %v1248 = vcombine.low %v1223, %v1231
      %v1249 = vcombine.high %v1223, %v1231
      %v1251 = vunpack.c.l.s4 1934713408
      %v1252 = vunpack.c.0.s8 %v1251
      %v1253 = vlaneseq
      %v1254 = vshrl.u32 %v1253, 7
      %v1255 = vsub.s32 %v1252, %v1254
      %v1256 = vrot.slane %v1248, %v1255
      %v1258 = vunpack.c.l.s4 1934713408
      %v1259 = vunpack.c.0.s8 %v1258
      %v1260 = vlaneseq
      %v1261 = vshrl.u32 %v1260, 7
      %v1262 = vsub.s32 %v1259, %v1261
      %v1263 = vrot.slane %v1249, %v1262
      %v1264 = vcombine.low %v1240, %v1256
      %v1265 = vcombine.high %v1240, %v1256
      %v1266 = vcombine.low %v1247, %v1263
      %v1267 = vcombine.high %v1247, %v1263
      %vm1268 = vcmask 64512
      %1269 = vst.msk [vmem:[%s450] sm:$0xff] %vm1268, %v1264
      %1270 = vst.msk [vmem:[%s450 + $0x8] sm:$0xff] %vm1268, %v1265
      %1271 = vst.msk [vmem:[%s450 + $0x10] sm:$0xff] %vm1268, %v1266
      %1272 = vst.msk [vmem:[%s450 + $0x18] sm:$0xff] %vm1268, %v1267
      %p1273 = scmp.lt.s32.totalorder %s25, 1
      %s1274 = scalar_select %p1273, %s25, 1
      %p1275 = scmp.lt.s32.totalorder %s26, 0
      %s1276 = scalar_select %p1275, %s26, 0
      %p1277 = scmp.lt.s32.totalorder %s27, 0
      %s1278 = scalar_select %p1277, %s27, 0
      %s1279 = sadd.s32 %s1278, %s1276
      %s1280 = smul.addr %s1274, 4
      %s1281 = sadd.s32 %s1279, %s1280
      %s1282 = smul.addr %s1281, 8
      %s1283 = scalar_lea.vmem %s9, %s1282
      // Predicated region
      $region57: #{_lambda_.3} parent=55 // pred_check
        %p1284 = pneg %p273
      $region58: #{_lambda_.3} parent=55 // pred_check_branch
        %1286 = sbr.rel (%p1284) target = $region60
      $region59: #{_lambda_.3} parent=55 // pred_region
        _
      $region60: #{_lambda_.3} parent=55 // pred_fallthru
        _
    $region56: #{_lambda_.3} parent=5 // pred_fallthru
      _
    %p1287 = scmp.le.s32.totalorder 2, %s15
    // Predicated region
    $region61: #{_lambda_.3} parent=5 // pred_check
      %p1288 = pneg %p1287
    $region62: #{_lambda_.3} parent=5 // pred_check_branch
      %1290 = sbr.rel (%p1288) target = $region64
    $region63: #{_lambda_.3} parent=5 // pred_region
      %s1291 = ssub.s32 %s15, 2
      // Predicated region
      $region65: #{_lambda_.3} parent=63 // pred_check
        %p1292 = pneg %p279
      $region66: #{_lambda_.3} parent=63 // pred_check_branch
        %1294 = sbr.rel (%p1292) target = $region68
      $region67: #{_lambda_.3} parent=63 // pred_region
        %p1295 = scmp.lt.s32.totalorder %s28, 1
        %s1296 = scalar_select %p1295, %s28, 1
        %p1297 = scmp.lt.s32.totalorder %s29, 0
        %s1298 = scalar_select %p1297, %s29, 0
        %p1299 = scmp.lt.s32.totalorder %s30, 0
        %s1300 = scalar_select %p1299, %s30, 0
        %s1301 = sadd.s32 %s1300, %s1298
        %s1302 = smul.addr %s1296, 4
        %s1303 = sadd.s32 %s1301, %s1302
        %s1304 = smul.addr %s1303, 8
        %s1305 = scalar_lea.vmem %s9, %s1304
      $region68: #{_lambda_.3} parent=63 // pred_fallthru
        _
    $region64: #{_lambda_.3} parent=5 // pred_fallthru
      _
  $region6: #{_lambda_.3} parent=0 // loop_footer
    %s19 = sadd.s32 1, %s15
  $region7: #{_lambda_.3} parent=0 // loop_footer_branch
    %14 = sbr.rel target = $region3
  $region8: #{_lambda_.3} parent=0 // loop_exit
    _

</llo_original>
